<compile_context>
chip_gen: v7x
topology: tpu7x:2x2x1
jax: 0.10.0
libtpu: 0.0.40
codegen_flags: <defaults>
</compile_context>

<pallas_src>
import functools

import jax
import jax.numpy as jnp
from jax.experimental import pallas as pl
from jax.experimental.pallas import tpu as pltpu


def raw_head_kernel(x_ref, w_ref, b_ref, o_ref, *, tap_offsets, l_out):
    """One (batch, row-tile) block of the 3x3 reflect-padded conv.

    x_ref: (1, 1, Cin, (TH+2)*Wp + 2)  flattened padded input tile (VMEM, read once)
    w_ref: (9, Cout, Cin)              per-tap weights (constant across the grid)
    b_ref: (Cout, 1)                   bias, f32
    o_ref: (1, 1, Cout, TH*Wp)         lane-dense output tile
    """
    acc = None
    for tap, off in enumerate(tap_offsets):            # statically unrolled: 9 taps
        xs = x_ref[0, 0, :, off:off + l_out]            # (Cin, TH*Wp) shifted view
        part = jnp.dot(w_ref[tap], xs, preferred_element_type=jnp.float32)
        acc = part if acc is None else acc + part
    o_ref[0, 0] = (acc + b_ref[...]).astype(o_ref.dtype)


def raw_head_forward(x_nchw, w_oihw, bias, *, row_tile=None, compute_dtype=None,
                     vmem_budget_bytes=4 * 1024 * 1024):
    """x_nchw: (N, Cin, H, W); w_oihw: (Cout, Cin, 3, 3); bias: (Cout,). Returns NCHW."""
    N, Cin, H, W = x_nchw.shape
    Cout = w_oihw.shape[0]
    dtype = jnp.dtype(compute_dtype) if compute_dtype is not None else x_nchw.dtype
    Wp = W + 2

    # ---- glue: reflect pad in native NCHW (matches ReflectionPad2d semantics) ----
    x_pad = jnp.pad(x_nchw, ((0, 0), (0, 0), (1, 1), (1, 1)), mode="reflect")

    # pick a row tile that divides H; keep double-buffered input tiles well under VMEM
    if row_tile is None:
        itemsize = jnp.dtype(dtype).itemsize
        rows_fit = vmem_budget_bytes // (2 * Cin * Wp * itemsize)
        row_tile = max(1, min(H, rows_fit - 2))
    row_tile = int(max(1, min(H, row_tile)))
    while H % row_tile:
        row_tile -= 1
    TH = row_tile
    T = H // TH

    # overlapping row windows with a 2-row halo; for T == 1 this is just x_pad itself
    tiles = [x_pad[:, :, t * TH:t * TH + TH + 2, :] for t in range(T)]
    x_tiles = jnp.stack(tiles, axis=1)                     # (N, T, Cin, TH+2, Wp)
    lin = (TH + 2) * Wp + 2                                # +2 so the last tap slice fits
    x_flat = jnp.pad(
        x_tiles.reshape(N, T, Cin, (TH + 2) * Wp),
        ((0, 0), (0, 0), (0, 0), (0, 2)),
    ).astype(dtype)                                        # (N, T, Cin, lin)

    # weights: OIHW -> (kh, kw, Cout, Cin) -> (9, Cout, Cin); bias -> (Cout, 1) f32
    w_taps = jnp.transpose(w_oihw, (2, 3, 0, 1)).reshape(9, Cout, Cin).astype(dtype)
    b2d = bias.reshape(Cout, 1).astype(jnp.float32)

    l_out = TH * Wp
    tap_offsets = tuple(kh * Wp + kw for kh in range(3) for kw in range(3))
    kernel = functools.partial(raw_head_kernel, tap_offsets=tap_offsets, l_out=l_out)

    out_flat = pl.pallas_call(
        kernel,
        out_shape=jax.ShapeDtypeStruct((N, T, Cout, l_out), dtype),
        grid_spec=pltpu.PrefetchScalarGridSpec(
            num_scalar_prefetch=0,
            grid=(N, T),
            in_specs=[
                pl.BlockSpec((1, 1, Cin, lin), lambda n, t: (n, t, 0, 0)),
                pl.BlockSpec((9, Cout, Cin), lambda n, t: (0, 0, 0)),   # loaded once
                pl.BlockSpec((Cout, 1), lambda n, t: (0, 0)),           # loaded once
            ],
            out_specs=pl.BlockSpec((1, 1, Cout, l_out), lambda n, t: (n, t, 0, 0)),
        ),
        compiler_params=pltpu.CompilerParams(
            dimension_semantics=("parallel", "parallel")
        ),
    )(x_flat, w_taps, b2d)

    # (N, T, Cout, TH*Wp) -> (N, Cout, H, W); junk columns (j >= W) are dropped here
    out = out_flat.reshape(N, T, Cout, TH, Wp)
    out = jnp.transpose(out, (0, 2, 1, 3, 4)).reshape(N, Cout, H, Wp)
    return out[:, :, :, :W]


def reference_forward(x_nchw, w_oihw, bias):
    x_pad = jnp.pad(x_nchw, ((0, 0), (0, 0), (1, 1), (1, 1)), mode="reflect")
    out = jax.lax.conv_general_dilated(
        x_pad, w_oihw, window_strides=(1, 1), padding="VALID",
        dimension_numbers=("NCHW", "OIHW", "NCHW"),
    )
    return out + bias.reshape(1, -1, 1, 1)


if __name__ == "__main__":
    width, block_size = 32, 2
    cout = block_size ** 2            # 4
    N, H, W = 2, 16, 16

    key = jax.random.PRNGKey(0)
    kx, kw, kb = jax.random.split(key, 3)
    x = jax.random.normal(kx, (N, width, H, W), dtype=jnp.float32)
    # deterministic synthetic conv params (shapes per nn.Conv2d(32, 4, 3, 1, 1))
    w = jax.random.normal(kw, (cout, width, 3, 3), dtype=jnp.float32) * 0.05
    b = jax.random.normal(kb, (cout,), dtype=jnp.float32) * 0.05

    ref = jax.block_until_ready(reference_forward(x, w, b))

    # 1) default path (single row tile at this size)
    out = jax.block_until_ready(raw_head_forward(x, w, b))
    assert out.shape == (N, cout, H, W), out.shape
    assert jnp.allclose(out, ref, atol=5e-4, rtol=5e-4), "mismatch (default tiling)"

    # 2) forced spatial tiling (exercises the multi row-tile / halo path used on v7x)
    out_t = jax.block_until_ready(raw_head_forward(x, w, b, row_tile=4))
    assert jnp.allclose(out_t, ref, atol=5e-4, rtol=5e-4), "mismatch (row_tile=4)"

    # 3) bf16 activations/weights with f32 MXU accumulation (v6e bandwidth optimization)
    out_bf = jax.block_until_ready(
        raw_head_forward(x, w, b, compute_dtype=jnp.bfloat16))
    assert jnp.allclose(out_bf.astype(jnp.float32), ref, atol=5e-2, rtol=5e-2), \
        "mismatch (bf16)"

    print("KERNEL_OK")
</pallas_src>

<mosaic_0001>
module attributes {stable_mosaic.version = 11 : i64} {
  func.func @raw_head_kernel(%arg0: i32, %arg1: i32, %arg2: memref<1x1x32x326xf32, #tpu.memory_space<vmem>>, %arg3: memref<9x4x32xf32, #tpu.memory_space<vmem>>, %arg4: memref<4x1xf32, #tpu.memory_space<vmem>>, %arg5: memref<1x1x4x288xf32, #tpu.memory_space<vmem>>) attributes {dimension_semantics = [#tpu.dimension_semantics<parallel>, #tpu.dimension_semantics<parallel>], iteration_bounds = array<i64: 2, 1>, scalar_prefetch = 0 : i64, scratch_operands = 0 : i64, tpu.core_type = #tpu.core_type<tc>, window_params = [{transform_indices = @transform_0, window_bounds = array<i64: 1, 1, 32, 326>}, {pipeline_mode = #tpu.pipeline_mode<synchronous>, transform_indices = @transform_1, window_bounds = array<i64: 9, 4, 32>}, {pipeline_mode = #tpu.pipeline_mode<synchronous>, transform_indices = @transform_2, window_bounds = array<i64: 4, 1>}, {transform_indices = @transform_3, window_bounds = array<i64: 1, 1, 4, 288>}]} {
    %c0 = arith.constant 0 : index
    %c0_0 = arith.constant 0 : index
    %c0_1 = arith.constant 0 : index
    %c0_2 = arith.constant 0 : index
    %0 = vector.load %arg2[%c0, %c0_0, %c0_1, %c0_2] : memref<1x1x32x326xf32, #tpu.memory_space<vmem>>, vector<1x1x32x288xf32>
    %1 = vector.shape_cast %0 : vector<1x1x32x288xf32> to vector<32x288xf32>
    %c0_3 = arith.constant 0 : index
    %c0_4 = arith.constant 0 : index
    %c0_5 = arith.constant 0 : index
    %2 = vector.load %arg3[%c0_3, %c0_4, %c0_5] : memref<9x4x32xf32, #tpu.memory_space<vmem>>, vector<1x4x32xf32>
    %3 = vector.shape_cast %2 : vector<1x4x32xf32> to vector<4x32xf32>
    %cst = arith.constant dense<0.000000e+00> : vector<4x288xf32>
    %4 = tpu.matmul %3, %1, %cst {dimension_numbers = #tpu.dot_dimension_numbers<[1], [0], [0], [1], [0, 0, 1, 1], [], []>} : vector<4x32xf32>, vector<32x288xf32>, vector<4x288xf32> -> vector<4x288xf32>
    %c0_6 = arith.constant 0 : index
    %c0_7 = arith.constant 0 : index
    %c0_8 = arith.constant 0 : index
    %c1 = arith.constant 1 : index
    %5 = vector.load %arg2[%c0_6, %c0_7, %c0_8, %c1] : memref<1x1x32x326xf32, #tpu.memory_space<vmem>>, vector<1x1x32x288xf32>
    %6 = vector.shape_cast %5 : vector<1x1x32x288xf32> to vector<32x288xf32>
    %c1_9 = arith.constant 1 : index
    %c0_10 = arith.constant 0 : index
    %c0_11 = arith.constant 0 : index
    %7 = vector.load %arg3[%c1_9, %c0_10, %c0_11] : memref<9x4x32xf32, #tpu.memory_space<vmem>>, vector<1x4x32xf32>
    %8 = vector.shape_cast %7 : vector<1x4x32xf32> to vector<4x32xf32>
    %cst_12 = arith.constant dense<0.000000e+00> : vector<4x288xf32>
    %9 = tpu.matmul %8, %6, %cst_12 {dimension_numbers = #tpu.dot_dimension_numbers<[1], [0], [0], [1], [0, 0, 1, 1], [], []>} : vector<4x32xf32>, vector<32x288xf32>, vector<4x288xf32> -> vector<4x288xf32>
    %10 = arith.addf %4, %9 : vector<4x288xf32>
    %c0_13 = arith.constant 0 : index
    %c0_14 = arith.constant 0 : index
    %c0_15 = arith.constant 0 : index
    %c2 = arith.constant 2 : index
    %11 = vector.load %arg2[%c0_13, %c0_14, %c0_15, %c2] : memref<1x1x32x326xf32, #tpu.memory_space<vmem>>, vector<1x1x32x288xf32>
    %12 = vector.shape_cast %11 : vector<1x1x32x288xf32> to vector<32x288xf32>
    %c2_16 = arith.constant 2 : index
    %c0_17 = arith.constant 0 : index
    %c0_18 = arith.constant 0 : index
    %13 = vector.load %arg3[%c2_16, %c0_17, %c0_18] : memref<9x4x32xf32, #tpu.memory_space<vmem>>, vector<1x4x32xf32>
    %14 = vector.shape_cast %13 : vector<1x4x32xf32> to vector<4x32xf32>
    %cst_19 = arith.constant dense<0.000000e+00> : vector<4x288xf32>
    %15 = tpu.matmul %14, %12, %cst_19 {dimension_numbers = #tpu.dot_dimension_numbers<[1], [0], [0], [1], [0, 0, 1, 1], [], []>} : vector<4x32xf32>, vector<32x288xf32>, vector<4x288xf32> -> vector<4x288xf32>
    %16 = arith.addf %10, %15 : vector<4x288xf32>
    %c0_20 = arith.constant 0 : index
    %c0_21 = arith.constant 0 : index
    %c0_22 = arith.constant 0 : index
    %c18 = arith.constant 18 : index
    %17 = vector.load %arg2[%c0_20, %c0_21, %c0_22, %c18] : memref<1x1x32x326xf32, #tpu.memory_space<vmem>>, vector<1x1x32x288xf32>
    %18 = vector.shape_cast %17 : vector<1x1x32x288xf32> to vector<32x288xf32>
    %c3 = arith.constant 3 : index
    %c0_23 = arith.constant 0 : index
    %c0_24 = arith.constant 0 : index
    %19 = vector.load %arg3[%c3, %c0_23, %c0_24] : memref<9x4x32xf32, #tpu.memory_space<vmem>>, vector<1x4x32xf32>
    %20 = vector.shape_cast %19 : vector<1x4x32xf32> to vector<4x32xf32>
    %cst_25 = arith.constant dense<0.000000e+00> : vector<4x288xf32>
    %21 = tpu.matmul %20, %18, %cst_25 {dimension_numbers = #tpu.dot_dimension_numbers<[1], [0], [0], [1], [0, 0, 1, 1], [], []>} : vector<4x32xf32>, vector<32x288xf32>, vector<4x288xf32> -> vector<4x288xf32>
    %22 = arith.addf %16, %21 : vector<4x288xf32>
    %c0_26 = arith.constant 0 : index
    %c0_27 = arith.constant 0 : index
    %c0_28 = arith.constant 0 : index
    %c19 = arith.constant 19 : index
    %23 = vector.load %arg2[%c0_26, %c0_27, %c0_28, %c19] : memref<1x1x32x326xf32, #tpu.memory_space<vmem>>, vector<1x1x32x288xf32>
    %24 = vector.shape_cast %23 : vector<1x1x32x288xf32> to vector<32x288xf32>
    %c4 = arith.constant 4 : index
    %c0_29 = arith.constant 0 : index
    %c0_30 = arith.constant 0 : index
    %25 = vector.load %arg3[%c4, %c0_29, %c0_30] : memref<9x4x32xf32, #tpu.memory_space<vmem>>, vector<1x4x32xf32>
    %26 = vector.shape_cast %25 : vector<1x4x32xf32> to vector<4x32xf32>
    %cst_31 = arith.constant dense<0.000000e+00> : vector<4x288xf32>
    %27 = tpu.matmul %26, %24, %cst_31 {dimension_numbers = #tpu.dot_dimension_numbers<[1], [0], [0], [1], [0, 0, 1, 1], [], []>} : vector<4x32xf32>, vector<32x288xf32>, vector<4x288xf32> -> vector<4x288xf32>
    %28 = arith.addf %22, %27 : vector<4x288xf32>
    %c0_32 = arith.constant 0 : index
    %c0_33 = arith.constant 0 : index
    %c0_34 = arith.constant 0 : index
    %c20 = arith.constant 20 : index
    %29 = vector.load %arg2[%c0_32, %c0_33, %c0_34, %c20] : memref<1x1x32x326xf32, #tpu.memory_space<vmem>>, vector<1x1x32x288xf32>
    %30 = vector.shape_cast %29 : vector<1x1x32x288xf32> to vector<32x288xf32>
    %c5 = arith.constant 5 : index
    %c0_35 = arith.constant 0 : index
    %c0_36 = arith.constant 0 : index
    %31 = vector.load %arg3[%c5, %c0_35, %c0_36] : memref<9x4x32xf32, #tpu.memory_space<vmem>>, vector<1x4x32xf32>
    %32 = vector.shape_cast %31 : vector<1x4x32xf32> to vector<4x32xf32>
    %cst_37 = arith.constant dense<0.000000e+00> : vector<4x288xf32>
    %33 = tpu.matmul %32, %30, %cst_37 {dimension_numbers = #tpu.dot_dimension_numbers<[1], [0], [0], [1], [0, 0, 1, 1], [], []>} : vector<4x32xf32>, vector<32x288xf32>, vector<4x288xf32> -> vector<4x288xf32>
    %34 = arith.addf %28, %33 : vector<4x288xf32>
    %c0_38 = arith.constant 0 : index
    %c0_39 = arith.constant 0 : index
    %c0_40 = arith.constant 0 : index
    %c36 = arith.constant 36 : index
    %35 = vector.load %arg2[%c0_38, %c0_39, %c0_40, %c36] : memref<1x1x32x326xf32, #tpu.memory_space<vmem>>, vector<1x1x32x288xf32>
    %36 = vector.shape_cast %35 : vector<1x1x32x288xf32> to vector<32x288xf32>
    %c6 = arith.constant 6 : index
    %c0_41 = arith.constant 0 : index
    %c0_42 = arith.constant 0 : index
    %37 = vector.load %arg3[%c6, %c0_41, %c0_42] : memref<9x4x32xf32, #tpu.memory_space<vmem>>, vector<1x4x32xf32>
    %38 = vector.shape_cast %37 : vector<1x4x32xf32> to vector<4x32xf32>
    %cst_43 = arith.constant dense<0.000000e+00> : vector<4x288xf32>
    %39 = tpu.matmul %38, %36, %cst_43 {dimension_numbers = #tpu.dot_dimension_numbers<[1], [0], [0], [1], [0, 0, 1, 1], [], []>} : vector<4x32xf32>, vector<32x288xf32>, vector<4x288xf32> -> vector<4x288xf32>
    %40 = arith.addf %34, %39 : vector<4x288xf32>
    %c0_44 = arith.constant 0 : index
    %c0_45 = arith.constant 0 : index
    %c0_46 = arith.constant 0 : index
    %c37 = arith.constant 37 : index
    %41 = vector.load %arg2[%c0_44, %c0_45, %c0_46, %c37] : memref<1x1x32x326xf32, #tpu.memory_space<vmem>>, vector<1x1x32x288xf32>
    %42 = vector.shape_cast %41 : vector<1x1x32x288xf32> to vector<32x288xf32>
    %c7 = arith.constant 7 : index
    %c0_47 = arith.constant 0 : index
    %c0_48 = arith.constant 0 : index
    %43 = vector.load %arg3[%c7, %c0_47, %c0_48] : memref<9x4x32xf32, #tpu.memory_space<vmem>>, vector<1x4x32xf32>
    %44 = vector.shape_cast %43 : vector<1x4x32xf32> to vector<4x32xf32>
    %cst_49 = arith.constant dense<0.000000e+00> : vector<4x288xf32>
    %45 = tpu.matmul %44, %42, %cst_49 {dimension_numbers = #tpu.dot_dimension_numbers<[1], [0], [0], [1], [0, 0, 1, 1], [], []>} : vector<4x32xf32>, vector<32x288xf32>, vector<4x288xf32> -> vector<4x288xf32>
    %46 = arith.addf %40, %45 : vector<4x288xf32>
    %c0_50 = arith.constant 0 : index
    %c0_51 = arith.constant 0 : index
    %c0_52 = arith.constant 0 : index
    %c38 = arith.constant 38 : index
    %47 = vector.load %arg2[%c0_50, %c0_51, %c0_52, %c38] : memref<1x1x32x326xf32, #tpu.memory_space<vmem>>, vector<1x1x32x288xf32>
    %48 = vector.shape_cast %47 : vector<1x1x32x288xf32> to vector<32x288xf32>
    %c8 = arith.constant 8 : index
    %c0_53 = arith.constant 0 : index
    %c0_54 = arith.constant 0 : index
    %49 = vector.load %arg3[%c8, %c0_53, %c0_54] : memref<9x4x32xf32, #tpu.memory_space<vmem>>, vector<1x4x32xf32>
    %50 = vector.shape_cast %49 : vector<1x4x32xf32> to vector<4x32xf32>
    %cst_55 = arith.constant dense<0.000000e+00> : vector<4x288xf32>
    %51 = tpu.matmul %50, %48, %cst_55 {dimension_numbers = #tpu.dot_dimension_numbers<[1], [0], [0], [1], [0, 0, 1, 1], [], []>} : vector<4x32xf32>, vector<32x288xf32>, vector<4x288xf32> -> vector<4x288xf32>
    %52 = arith.addf %46, %51 : vector<4x288xf32>
    %c0_56 = arith.constant 0 : index
    %c0_57 = arith.constant 0 : index
    %53 = vector.load %arg4[%c0_56, %c0_57] : memref<4x1xf32, #tpu.memory_space<vmem>>, vector<4x1xf32>
    %54 = vector.broadcast %53 : vector<4x1xf32> to vector<4x288xf32>
    %55 = arith.addf %52, %54 : vector<4x288xf32>
    %c0_58 = arith.constant 0 : index
    %c0_59 = arith.constant 0 : index
    %c0_60 = arith.constant 0 : index
    %c0_61 = arith.constant 0 : index
    %56 = vector.load %arg5[%c0_58, %c0_59, %c0_60, %c0_61] : memref<1x1x4x288xf32, #tpu.memory_space<vmem>>, vector<1x1x4x288xf32>
    %57 = vector.shape_cast %56 : vector<1x1x4x288xf32> to vector<4x288xf32>
    %58 = vector.shape_cast %55 : vector<4x288xf32> to vector<1x1x4x288xf32>
    tpu.vector_store %arg5[%c0_58, %c0_59, %c0_60, %c0_61], %58 {strides = array<i32>} : memref<1x1x4x288xf32, #tpu.memory_space<vmem>>, vector<1x1x4x288xf32>,
    return
  }
  func.func @transform_0(%arg0: i32, %arg1: i32) -> (i32, i32, i32, i32) {
    %c0_i32 = arith.constant 0 : i32
    %c0_i32_0 = arith.constant 0 : i32
    %c0_i32_1 = arith.constant 0 : i32
    return %arg0, %arg1, %c0_i32, %c0_i32_0 : i32, i32, i32, i32
  }
  func.func @transform_1(%arg0: i32, %arg1: i32) -> (i32, i32, i32) {
    %c0_i32 = arith.constant 0 : i32
    %c0_i32_0 = arith.constant 0 : i32
    %c0_i32_1 = arith.constant 0 : i32
    %c0_i32_2 = arith.constant 0 : i32
    return %c0_i32, %c0_i32_0, %c0_i32_1 : i32, i32, i32
  }
  func.func @transform_2(%arg0: i32, %arg1: i32) -> (i32, i32) {
    %c0_i32 = arith.constant 0 : i32
    %c0_i32_0 = arith.constant 0 : i32
    %c0_i32_1 = arith.constant 0 : i32
    return %c0_i32, %c0_i32_0 : i32, i32
  }
  func.func @transform_3(%arg0: i32, %arg1: i32) -> (i32, i32, i32, i32) {
    %c0_i32 = arith.constant 0 : i32
    %c0_i32_0 = arith.constant 0 : i32
    %c0_i32_1 = arith.constant 0 : i32
    return %arg0, %arg1, %c0_i32, %c0_i32_0 : i32, i32, i32, i32
  }
}

</mosaic_0001>

<llo_original>
// kernel: tpu_custom_call.1
$region0: #{tpu_custom_call.1}
  #allocation0 [shape = 'u32[]', space=smem, size = 0x4, offset = 0x4, fixed_abs, tag = 'smem constant byte address 0x4 - core index']
  #allocation1 [shape = 'u32[144,128]{1,0:T(1,128)}', space=vmem, size = 0x12000, scoped, tag = 'internal scratch']
  %s0 = inlined_call_operand.hbm [shape: f32[2,1,32,326], index: 0, kind: input, shape index: {}]
  %s1 = inlined_call_operand.hbm [shape: f32[9,4,32], index: 1, kind: input, shape index: {}]
  %s2 = inlined_call_operand.vmem [shape: f32[4,1], index: 2, kind: input, shape index: {}]
  %s3 = inlined_call_operand.hbm [shape: f32[2,1,4,288], index: 3, kind: output, shape index: {}]
  %s4 = sld [smem:[#allocation0]]
  $region53: #{tpu_custom_call.1} parent=0
    _
  %s6 = ssub.s32 1, %s4
  %s7 = scalar_select 0, %s6, %s4
  $region1: #{tpu_custom_call.1} parent=0
    #allocation2 [shape = 'u8[98304]{0}', space=vmem, size = 0x18000, scoped, tag = 'input window, operand 0']
    #allocation3 [shape = 's32[2]{0}', space=sflag, size = 0x8, scoped, tag = 'scoped memory for tpu_custom_call.1']
    #allocation4 [shape = 's32[2]{0}', space=sflag, size = 0x8, scoped, tag = 'scoped memory for tpu_custom_call.1']
    #allocation5 [shape = 'u8[18432]{0}', space=vmem, size = 0x4800, scoped, tag = 'input window, operand 1, single buffered']
    #allocation6 [shape = 's32[1]{0}', space=sflag, size = 0x4, scoped, tag = 'scoped memory for tpu_custom_call.1']
    #allocation7 [shape = 'u8[12288]{0}', space=vmem, size = 0x3000, scoped, tag = 'output window, operand 0']
    %8 = vsyncpa [#allocation3], 0
    %s9 = scalar_lea.sflag [#allocation3], 1
    %10 = vsyncpa %s9, 0
    %11 = vsyncpa [#allocation6], 0
    %12 = vsyncpa [#allocation4], 0
    %s13 = scalar_lea.sflag [#allocation4], 1
    %14 = vsyncpa %s13, 0
    loop: start=0, step=1, limit=4
    $region2: #{tpu_custom_call.1} parent=1 // loop_pre_header
      _
    $region3: #{tpu_custom_call.1} parent=1 // loop_header
      %s16 = sphi 0, %s20
      %p17 = scmp.ge.s32.totalorder %s16, 4
      %s23 = sphi 0, %s35
      %s24 = sphi 0, %s31
      %s25 = sphi 0, %s23
      %s26 = sphi 0, %s24
      %s27 = sphi 0, %s25
      %s28 = sphi 0, %s26
      %s40 = sphi 0, %s42
      %s43 = sphi 0, %s40
      %s44 = sphi 0, %s43
      %s60 = sphi 0, %s44
      %s64 = sphi 0, %s64
      %s66 = sphi 0, %s64
      %s67 = sphi 0, %s66
      %s81 = sphi 0, %s67
      %s85 = sphi 0, %s85
      %s87 = sphi 0, %s85
      %s88 = sphi 0, %s87
      %s102 = sphi 0, %s88
      %s110 = sphi 0, %s112
      %s113 = sphi 0, %s110
      %s114 = sphi 0, %s113
      %s130 = sphi 0, %s114
    $region4: #{tpu_custom_call.1} parent=1 // loop_header_branch
      %19 = sbr.rel (%p17) target = $region8
    $region5: #{tpu_custom_call.1} parent=1 // loop_body
      %s21 = ssub.s32 %s16, 1
      %s22 = ssub.s32 %s16, 2
      %s29 = sadd.s32 1, %s24
      %p30 = scmp.ge.s32.totalorder %s29, 1
      %s31 = scalar_select %p30, 0, %s29
      %s32 = sadd.s32 1, %s23
      %s33 = scalar_select %p30, %s32, %s23
      %p34 = scmp.ge.s32.totalorder %s33, 2
      %s35 = scalar_select %p34, 0, %s33
      %s36 = ssub.s32 %s23, %s35
      %s37 = ssub.s32 %s24, %s31
      %s38 = sor.u32 %s36, %s37
      %p39 = scmp.eq.s32.totalorder %s38, 0
      %s41 = sadd.s32 %s40, 1
      %s42 = scalar_select %p39, %s40, %s41
      %p45 = pneg %p39
      %p46 = scmp.eq.s32.totalorder %s16, 1
      %p47 = por %p45, %p46
      %p48 = scmp.ne.s32.totalorder %s40, %s43
      %p49 = scmp.eq.s32.totalorder %s16, 0
      %p50 = por %p48, %p49
      %p51 = scmp.ne.s32.totalorder %s40, %s43
      %p52 = scmp.eq.s32.totalorder %s21, 1
      %p53 = por %p51, %p52
      %p54 = scmp.ne.s32.totalorder %s43, %s44
      %p55 = scmp.eq.s32.totalorder %s21, 0
      %p56 = por %p54, %p55
      %p57 = scmp.ne.s32.totalorder %s43, %s44
      %p58 = scmp.eq.s32.totalorder %s22, 1
      %p59 = por %p57, %p58
      %p61 = scmp.ne.s32.totalorder %s44, %s60
      %p62 = scmp.eq.s32.totalorder %s22, 0
      %p63 = por %p61, %p62
      %s65 = sadd.s32 %s64, 1
      %p68 = scmp.eq.s32.totalorder %s16, 1
      %p69 = scmp.ne.s32.totalorder %s64, %s66
      %p70 = scmp.eq.s32.totalorder %s16, 0
      %p71 = por %p69, %p70
      %p72 = scmp.ne.s32.totalorder %s64, %s66
      %p73 = scmp.eq.s32.totalorder %s21, 1
      %p74 = por %p72, %p73
      %p75 = scmp.ne.s32.totalorder %s66, %s67
      %p76 = scmp.eq.s32.totalorder %s21, 0
      %p77 = por %p75, %p76
      %p78 = scmp.ne.s32.totalorder %s66, %s67
      %p79 = scmp.eq.s32.totalorder %s22, 1
      %p80 = por %p78, %p79
      %p82 = scmp.ne.s32.totalorder %s67, %s81
      %p83 = scmp.eq.s32.totalorder %s22, 0
      %p84 = por %p82, %p83
      %s86 = sadd.s32 %s85, 1
      %p89 = scmp.eq.s32.totalorder %s16, 1
      %p90 = scmp.ne.s32.totalorder %s85, %s87
      %p91 = scmp.eq.s32.totalorder %s16, 0
      %p92 = por %p90, %p91
      %p93 = scmp.ne.s32.totalorder %s85, %s87
      %p94 = scmp.eq.s32.totalorder %s21, 1
      %p95 = por %p93, %p94
      %p96 = scmp.ne.s32.totalorder %s87, %s88
      %p97 = scmp.eq.s32.totalorder %s21, 0
      %p98 = por %p96, %p97
      %p99 = scmp.ne.s32.totalorder %s87, %s88
      %p100 = scmp.eq.s32.totalorder %s22, 1
      %p101 = por %p99, %p100
      %p103 = scmp.ne.s32.totalorder %s88, %s102
      %p104 = scmp.eq.s32.totalorder %s22, 0
      %p105 = por %p103, %p104
      %s106 = ssub.s32 %s23, %s35
      %s107 = ssub.s32 %s24, %s31
      %s108 = sor.u32 %s106, %s107
      %p109 = scmp.eq.s32.totalorder %s108, 0
      %s111 = sadd.s32 %s110, 1
      %s112 = scalar_select %p109, %s110, %s111
      %p115 = pneg %p109
      %p116 = scmp.eq.s32.totalorder %s16, 1
      %p117 = por %p115, %p116
      %p118 = scmp.ne.s32.totalorder %s110, %s113
      %p119 = scmp.eq.s32.totalorder %s16, 0
      %p120 = por %p118, %p119
      %p121 = scmp.ne.s32.totalorder %s110, %s113
      %p122 = scmp.eq.s32.totalorder %s21, 1
      %p123 = por %p121, %p122
      %p124 = scmp.ne.s32.totalorder %s113, %s114
      %p125 = scmp.eq.s32.totalorder %s21, 0
      %p126 = por %p124, %p125
      %p127 = scmp.ne.s32.totalorder %s113, %s114
      %p128 = scmp.eq.s32.totalorder %s22, 1
      %p129 = por %p127, %p128
      %p131 = scmp.ne.s32.totalorder %s114, %s130
      %p132 = scmp.eq.s32.totalorder %s22, 0
      %p133 = por %p131, %p132
      %p134 = scmp.le.s32.totalorder 1, %s16
      %p135 = scmp.lt.s32.totalorder %s16, 3
      %p136 = pnand %p134, %p135
      %p137 = pneg %p136
      // Predicated region
      $region9: #{tpu_custom_call.1} parent=5 // pred_check
        _
      $region10: #{tpu_custom_call.1} parent=5 // pred_check_branch
        %139 = sbr.rel (%p136) target = $region12
      $region11: #{tpu_custom_call.1} parent=5 // pred_region
        %s140 = ssub.s32 %s16, 1
        // Predicated region
        $region13: #{tpu_custom_call.1} parent=11 // pred_check
          %p141 = pneg %p77
        $region14: #{tpu_custom_call.1} parent=11 // pred_check_branch
          %143 = sbr.rel (%p141) target = $region16
        $region15: #{tpu_custom_call.1} parent=11 // pred_region
          %s145 = ssub.s32 576, 576
          %146 = vsyncadd [#allocation6], %s145
          %s147 = sshll.u32 [#allocation5], 4
          %s148 = int_to_ptr.vmem [resolvable:$true] %s147
          %153 = dma.hbm_to_vmem [thread:$0]  %s1, 576, %s148, [#allocation6], 64, 64, 4
        $region16: #{tpu_custom_call.1} parent=11 // pred_fallthru
          _
        // Predicated region
        $region17: #{tpu_custom_call.1} parent=11 // pred_check
          %p154 = pneg %p98
        $region18: #{tpu_custom_call.1} parent=11 // pred_check_branch
          %156 = sbr.rel (%p154) target = $region20
        $region19: #{tpu_custom_call.1} parent=11 // pred_region
          _
        $region20: #{tpu_custom_call.1} parent=11 // pred_fallthru
          _
      $region12: #{tpu_custom_call.1} parent=5 // pred_fallthru
        _
      %p157 = scmp.lt.s32.totalorder %s16, 2
      // Predicated region
      $region21: #{tpu_custom_call.1} parent=5 // pred_check
        %p158 = pneg %p157
      $region22: #{tpu_custom_call.1} parent=5 // pred_check_branch
        %160 = sbr.rel (%p158) target = $region24
      $region23: #{tpu_custom_call.1} parent=5 // pred_region
        // Predicated region
        $region25: #{tpu_custom_call.1} parent=23 // pred_check
          %p161 = pneg %p50
        $region26: #{tpu_custom_call.1} parent=23 // pred_check_branch
          %163 = sbr.rel (%p161) target = $region28
        $region27: #{tpu_custom_call.1} parent=23 // pred_region
          %s164 = sand.u32 %s40, 1
          %s165 = scalar_lea.sflag [#allocation3], %s164
          %s166 = sand.u32 %s40, 1
          %s167 = smul.addr %s166, 96
          %s168 = scalar_lea.vmem [#allocation2], %s167
          %s170 = ssub.s32 1536, 1536
          %171 = vsyncadd %s165, %s170
          %s172 = smul.addr %s24, 12
          %s173 = smul.addr %s23, 12
          %s174 = sadd.s32 %s172, %s173
          %s175 = smul.addr %s174, 128
          %s176 = scalar_lea.hbm %s0, %s175
          %s177 = sshll.u32 %s168, 4
          %s178 = int_to_ptr.vmem [resolvable:$true] %s177
          %183 = dma.hbm_to_vmem [thread:$0]  %s176, 1536, %s178, %s165, 384, 384, 24
        $region28: #{tpu_custom_call.1} parent=23 // pred_fallthru
          _
      $region24: #{tpu_custom_call.1} parent=5 // pred_fallthru
        _
      %p184 = scmp.le.s32.totalorder 1, %s16
      %p185 = scmp.lt.s32.totalorder %s16, 3
      %p186 = pnand %p184, %p185
      %p187 = pneg %p186
      // Predicated region
      $region29: #{tpu_custom_call.1} parent=5 // pred_check
        _
      $region30: #{tpu_custom_call.1} parent=5 // pred_check_branch
        %189 = sbr.rel (%p186) target = $region32
      $region31: #{tpu_custom_call.1} parent=5 // pred_region
        %s190 = ssub.s32 %s16, 1
        %s191 = sand.u32 %s43, 1
        %s192 = scalar_lea.sflag [#allocation3], %s191
        %s193 = sand.u32 %s43, 1
        %s194 = smul.addr %s193, 96
        %s195 = scalar_lea.vmem [#allocation2], %s194
        // Predicated region
        $region33: #{tpu_custom_call.1} parent=31 // pred_check
          %p196 = pneg %p56
        $region34: #{tpu_custom_call.1} parent=31 // pred_check_branch
          %198 = sbr.rel (%p196) target = $region36
        $region35: #{tpu_custom_call.1} parent=31 // pred_region
          %199 = dma.done %s192, 1536
        $region36: #{tpu_custom_call.1} parent=31 // pred_fallthru
          _
        // Predicated region
        $region37: #{tpu_custom_call.1} parent=31 // pred_check
          %p200 = pneg %p77
        $region38: #{tpu_custom_call.1} parent=31 // pred_check_branch
          %202 = sbr.rel (%p200) target = $region40
        $region39: #{tpu_custom_call.1} parent=31 // pred_region
          %203 = dma.done [#allocation6], 576
        $region40: #{tpu_custom_call.1} parent=31 // pred_fallthru
          _
        %s204 = sand.u32 %s43, 1
        %s205 = scalar_lea.sflag [#allocation3], %s204
        %s206 = sand.u32 %s43, 1
        %s207 = smul.addr %s206, 96
        %s208 = scalar_lea.vmem [#allocation2], %s207
        %p209 = pneg %p56
        %p210 = pneg %p53
        %p211 = pneg %p77
        %p212 = pneg %p74
        %p213 = pneg %p98
        %p214 = pneg %p95
        %p215 = pneg %p126
        %p216 = pneg %p123
        %s217 = sand.u32 %s113, 1
        %s218 = scalar_lea.sflag [#allocation4], %s217
        %s219 = sand.u32 %s113, 1
        %s220 = smul.addr %s219, 12
        %s221 = scalar_lea.vmem [#allocation7], %s220
        %v222 = vld [vmem:[%s195] sm:$0xff]
        %v223 = vld [vmem:[%s195 + $0x8] sm:$0xff]
        %v224 = vld [vmem:[%s195 + $0x10] sm:$0xff]
        %v225 = vld [vmem:[%s195 + $0x18] sm:$0xff]
        %v226 = vld [vmem:[%s195 + $0x20] sm:$0xff]
        %v227 = vld [vmem:[%s195 + $0x28] sm:$0xff]
        %v228 = vld [vmem:[%s195 + $0x30] sm:$0xff]
        %v229 = vld [vmem:[%s195 + $0x38] sm:$0xff]
        %v230 = vld [vmem:[%s195 + $0x40] sm:$0xff]
        %v231 = vld [vmem:[%s195 + $0x48] sm:$0xff]
        %v232 = vld [vmem:[%s195 + $0x50] sm:$0xff]
        %v233 = vld [vmem:[%s195 + $0x58] sm:$0xff]
        %v234 = vld [vmem:[#allocation5] sm:$0xf]
        %s235 = scalar_lea.vmem [#allocation5], 4
        %v236 = vld [vmem:[%s235] sm:$0xf]
        %249 = vrot.lane.b32.xlu0 %v222, 127
        %v250 = vpop.permute.xlu0 %249
        %251 = vrot.lane.b32.xlu0 %v223, 127
        %v252 = vpop.permute.xlu0 %251
        %253 = vrot.lane.b32.xlu0 %v224, 127
        %v254 = vpop.permute.xlu0 %253
        %255 = vrot.lane.b32.xlu0 %v225, 127
        %v256 = vpop.permute.xlu0 %255
        %257 = vrot.lane.b32.xlu0 %v226, 127
        %v258 = vpop.permute.xlu0 %257
        %259 = vrot.lane.b32.xlu0 %v227, 127
        %v260 = vpop.permute.xlu0 %259
        %261 = vrot.lane.b32.xlu0 %v228, 127
        %v262 = vpop.permute.xlu0 %261
        %263 = vrot.lane.b32.xlu0 %v229, 127
        %v264 = vpop.permute.xlu0 %263
        %265 = vrot.lane.b32.xlu0 %v230, 127
        %v266 = vpop.permute.xlu0 %265
        %267 = vrot.lane.b32.xlu0 %v231, 127
        %v268 = vpop.permute.xlu0 %267
        %269 = vrot.lane.b32.xlu0 %v232, 127
        %v270 = vpop.permute.xlu0 %269
        %271 = vrot.lane.b32.xlu0 %v233, 127
        %v272 = vpop.permute.xlu0 %271
        %vm273 = vcmask 1039360
        %v274 = vsel %vm273, %v250, %v252
        %v275 = vsel %vm273, %v252, %v254
        %v276 = vsel %vm273, %v256, %v258
        %v277 = vsel %vm273, %v258, %v260
        %v278 = vsel %vm273, %v262, %v264
        %v279 = vsel %vm273, %v264, %v266
        %v280 = vsel %vm273, %v268, %v270
        %v281 = vsel %vm273, %v270, %v272
        %vm294 = vcmask 261120
        %v296 = vsel %vm294, %v236, 0
        %298 = vmatprep.subr.mxu0 %v275
        %299 = vmatpush1.msra.mxu0 %v274
        %300 = vmatprep.subr.mxu0 %v277
        %301 = vmatpush1.msra.mxu0 %v276
        %302 = vmatprep.subr.mxu0 %v279
        %303 = vmatpush1.msra.mxu0 %v278
        %304 = vmatprep.subr.mxu0 %v281
        %305 = vmatpush1.msra.mxu0 %v280
        %306 = vmatprep.subr.mxu0 0.0
        %307 = vmatpush1.msra.mxu0 0.0
        %308 = vmatprep.subr.mxu0 0.0
        %309 = vmatpush1.msra.mxu0 0.0
        %310 = vmatprep.subr.mxu0 0.0
        %311 = vmatpush1.msra.mxu0 0.0
        %312 = vmatprep.subr.mxu0 0.0
        %313 = vmatpush1.msra.mxu0 0.0
        %314 = vmatprep.subr.mxu0 0.0
        %315 = vmatpush1.msra.mxu0 0.0
        %316 = vmatprep.subr.mxu0 0.0
        %317 = vmatpush1.msra.mxu0 0.0
        %318 = vmatprep.subr.mxu0 0.0
        %319 = vmatpush1.msra.mxu0 0.0
        %320 = vmatprep.subr.mxu0 0.0
        %321 = vmatpush1.msra.mxu0 0.0
        %322 = vmatprep.subr.mxu0 0.0
        %323 = vmatpush1.msra.mxu0 0.0
        %324 = vmatprep.subr.mxu0 0.0
        %325 = vmatpush1.msra.mxu0 0.0
        %326 = vmatprep.subr.mxu0 0.0
        %327 = vmatpush1.msra.mxu0 0.0
        %328 = vmatprep.subr.mxu0 0.0
        %329 = vmatpush1.msra.mxu0 0.0
        %330 = vmatprep.subr.mxu0 0.0
        %331 = vmatpush1.msra.mxu0 0.0
        %332 = vmatprep.subr.mxu0 0.0
        %333 = vmatpush1.msra.mxu0 0.0
        %334 = vmatprep.subr.mxu0 0.0
        %335 = vmatpush1.msra.mxu0 0.0
        %336 = vmatprep.subr.mxu0 0.0
        %337 = vmatpush1.msra.mxu0 0.0
        %338 = vmatprep.subr.mxu0 0.0
        %339 = vmatpush1.msra.mxu0 0.0
        %340 = vmatprep.subr.mxu0 0.0
        %341 = vmatpush1.msra.mxu0 0.0
        %342 = vmatprep.subr.mxu0 0.0
        %343 = vmatpush1.msra.mxu0 0.0
        %344 = vmatprep.subr.mxu0 0.0
        %345 = vmatpush1.msra.mxu0 0.0
        %346 = vmatprep.subr.mxu0 0.0
        %347 = vmatpush1.msra.mxu0 0.0
        %348 = vmatprep.subr.mxu0 0.0
        %349 = vmatpush1.msra.mxu0 0.0
        %350 = vmatprep.subr.mxu0 0.0
        %351 = vmatpush1.msra.mxu0 0.0
        %352 = vmatprep.subr.mxu0 0.0
        %353 = vmatpush1.msra.mxu0 0.0
        %354 = vmatprep.subr.mxu0 0.0
        %355 = vmatpush1.msra.mxu0 0.0
        %356 = vmatprep.subr.mxu0 0.0
        %357 = vmatpush1.msra.mxu0 0.0
        %358 = vmatprep.subr.mxu0 0.0
        %359 = vmatpush1.msra.mxu0 0.0
        %360 = vmatprep.subr.mxu0 0.0
        %361 = vmatpush1.msra.mxu0 0.0
        %362 = vmatprep.mubr.f32.mxu0 0.0
        %363 = vmatmul.mubr.f32.gmra.mrb[0].mxu0 %v296
        %v364 = vpop.f32.mrb[0].mxu0
        %v365 = vadd.f32 0.0, %v364
        %v366 = vpop.f32.mrb[0].mxu0
        %v367 = vadd.f32 0.0, %v366
        %368 = vdwg.mxu0
        %369 = vmatprep.subr.mxu0 0.0
        %370 = vmatpush1.msra.mxu0 %v254
        %371 = vmatprep.subr.mxu0 0.0
        %372 = vmatpush1.msra.mxu0 %v260
        %373 = vmatprep.subr.mxu0 0.0
        %374 = vmatpush1.msra.mxu0 %v266
        %375 = vmatprep.subr.mxu0 0.0
        %376 = vmatpush1.msra.mxu0 %v272
        %377 = vmatprep.subr.mxu0 0.0
        %378 = vmatpush1.msra.mxu0 0.0
        %379 = vmatprep.subr.mxu0 0.0
        %380 = vmatpush1.msra.mxu0 0.0
        %381 = vmatprep.subr.mxu0 0.0
        %382 = vmatpush1.msra.mxu0 0.0
        %383 = vmatprep.subr.mxu0 0.0
        %384 = vmatpush1.msra.mxu0 0.0
        %385 = vmatprep.subr.mxu0 0.0
        %386 = vmatpush1.msra.mxu0 0.0
        %387 = vmatprep.subr.mxu0 0.0
        %388 = vmatpush1.msra.mxu0 0.0
        %389 = vmatprep.subr.mxu0 0.0
        %390 = vmatpush1.msra.mxu0 0.0
        %391 = vmatprep.subr.mxu0 0.0
        %392 = vmatpush1.msra.mxu0 0.0
        %393 = vmatprep.subr.mxu0 0.0
        %394 = vmatpush1.msra.mxu0 0.0
        %395 = vmatprep.subr.mxu0 0.0
        %396 = vmatpush1.msra.mxu0 0.0
        %397 = vmatprep.subr.mxu0 0.0
        %398 = vmatpush1.msra.mxu0 0.0
        %399 = vmatprep.subr.mxu0 0.0
        %400 = vmatpush1.msra.mxu0 0.0
        %401 = vmatprep.subr.mxu0 0.0
        %402 = vmatpush1.msra.mxu0 0.0
        %403 = vmatprep.subr.mxu0 0.0
        %404 = vmatpush1.msra.mxu0 0.0
        %405 = vmatprep.subr.mxu0 0.0
        %406 = vmatpush1.msra.mxu0 0.0
        %407 = vmatprep.subr.mxu0 0.0
        %408 = vmatpush1.msra.mxu0 0.0
        %409 = vmatprep.subr.mxu0 0.0
        %410 = vmatpush1.msra.mxu0 0.0
        %411 = vmatprep.subr.mxu0 0.0
        %412 = vmatpush1.msra.mxu0 0.0
        %413 = vmatprep.subr.mxu0 0.0
        %414 = vmatpush1.msra.mxu0 0.0
        %415 = vmatprep.subr.mxu0 0.0
        %416 = vmatpush1.msra.mxu0 0.0
        %417 = vmatprep.subr.mxu0 0.0
        %418 = vmatpush1.msra.mxu0 0.0
        %419 = vmatprep.subr.mxu0 0.0
        %420 = vmatpush1.msra.mxu0 0.0
        %421 = vmatprep.subr.mxu0 0.0
        %422 = vmatpush1.msra.mxu0 0.0
        %423 = vmatprep.subr.mxu0 0.0
        %424 = vmatpush1.msra.mxu0 0.0
        %425 = vmatprep.subr.mxu0 0.0
        %426 = vmatpush1.msra.mxu0 0.0
        %427 = vmatprep.subr.mxu0 0.0
        %428 = vmatpush1.msra.mxu0 0.0
        %429 = vmatprep.subr.mxu0 0.0
        %430 = vmatpush1.msra.mxu0 0.0
        %431 = vmatprep.subr.mxu0 0.0
        %432 = vmatpush1.msra.mxu0 0.0
        %433 = vmatprep.mubr.f32.mxu0 0.0
        %434 = vmatmul.mubr.f32.gmra.mrb[0].mxu0 %v296
        %v435 = vpop.f32.mrb[0].mxu0
        %v436 = vadd.f32 0.0, %v435
        %v437 = vpop.f32.mrb[0].mxu0
        %438 = vdwg.mxu0
        %v440 = vsel %vm294, %v234, 0
        %442 = vmatprep.subr.mxu0 %v223
        %443 = vmatpush1.msra.mxu0 %v222
        %444 = vmatprep.subr.mxu0 %v226
        %445 = vmatpush1.msra.mxu0 %v225
        %446 = vmatprep.subr.mxu0 %v229
        %447 = vmatpush1.msra.mxu0 %v228
        %448 = vmatprep.subr.mxu0 %v232
        %449 = vmatpush1.msra.mxu0 %v231
        %450 = vmatprep.subr.mxu0 0.0
        %451 = vmatpush1.msra.mxu0 0.0
        %452 = vmatprep.subr.mxu0 0.0
        %453 = vmatpush1.msra.mxu0 0.0
        %454 = vmatprep.subr.mxu0 0.0
        %455 = vmatpush1.msra.mxu0 0.0
        %456 = vmatprep.subr.mxu0 0.0
        %457 = vmatpush1.msra.mxu0 0.0
        %458 = vmatprep.subr.mxu0 0.0
        %459 = vmatpush1.msra.mxu0 0.0
        %460 = vmatprep.subr.mxu0 0.0
        %461 = vmatpush1.msra.mxu0 0.0
        %462 = vmatprep.subr.mxu0 0.0
        %463 = vmatpush1.msra.mxu0 0.0
        %464 = vmatprep.subr.mxu0 0.0
        %465 = vmatpush1.msra.mxu0 0.0
        %466 = vmatprep.subr.mxu0 0.0
        %467 = vmatpush1.msra.mxu0 0.0
        %468 = vmatprep.subr.mxu0 0.0
        %469 = vmatpush1.msra.mxu0 0.0
        %470 = vmatprep.subr.mxu0 0.0
        %471 = vmatpush1.msra.mxu0 0.0
        %472 = vmatprep.subr.mxu0 0.0
        %473 = vmatpush1.msra.mxu0 0.0
        %474 = vmatprep.subr.mxu0 0.0
        %475 = vmatpush1.msra.mxu0 0.0
        %476 = vmatprep.subr.mxu0 0.0
        %477 = vmatpush1.msra.mxu0 0.0
        %478 = vmatprep.subr.mxu0 0.0
        %479 = vmatpush1.msra.mxu0 0.0
        %480 = vmatprep.subr.mxu0 0.0
        %481 = vmatpush1.msra.mxu0 0.0
        %482 = vmatprep.subr.mxu0 0.0
        %483 = vmatpush1.msra.mxu0 0.0
        %484 = vmatprep.subr.mxu0 0.0
        %485 = vmatpush1.msra.mxu0 0.0
        %486 = vmatprep.subr.mxu0 0.0
        %487 = vmatpush1.msra.mxu0 0.0
        %488 = vmatprep.subr.mxu0 0.0
        %489 = vmatpush1.msra.mxu0 0.0
        %490 = vmatprep.subr.mxu0 0.0
        %491 = vmatpush1.msra.mxu0 0.0
        %492 = vmatprep.subr.mxu0 0.0
        %493 = vmatpush1.msra.mxu0 0.0
        %494 = vmatprep.subr.mxu0 0.0
        %495 = vmatpush1.msra.mxu0 0.0
        %496 = vmatprep.subr.mxu0 0.0
        %497 = vmatpush1.msra.mxu0 0.0
        %498 = vmatprep.subr.mxu0 0.0
        %499 = vmatpush1.msra.mxu0 0.0
        %500 = vmatprep.subr.mxu0 0.0
        %501 = vmatpush1.msra.mxu0 0.0
        %502 = vmatprep.subr.mxu0 0.0
        %503 = vmatpush1.msra.mxu0 0.0
        %504 = vmatprep.subr.mxu0 0.0
        %505 = vmatpush1.msra.mxu0 0.0
        %506 = vmatprep.mubr.f32.mxu0 0.0
        %507 = vmatmul.mubr.f32.gmra.mrb[0].mxu0 %v440
        %v508 = vpop.f32.mrb[0].mxu0
        %v509 = vadd.f32 %v365, %v508
        %v510 = vpop.f32.mrb[0].mxu0
        %v511 = vadd.f32 %v367, %v510
        %512 = vdwg.mxu0
        %513 = vmatprep.subr.mxu0 0.0
        %514 = vmatpush1.msra.mxu0 %v224
        %515 = vmatprep.subr.mxu0 0.0
        %516 = vmatpush1.msra.mxu0 %v227
        %517 = vmatprep.subr.mxu0 0.0
        %518 = vmatpush1.msra.mxu0 %v230
        %519 = vmatprep.subr.mxu0 0.0
        %520 = vmatpush1.msra.mxu0 %v233
        %521 = vmatprep.subr.mxu0 0.0
        %522 = vmatpush1.msra.mxu0 0.0
        %523 = vmatprep.subr.mxu0 0.0
        %524 = vmatpush1.msra.mxu0 0.0
        %525 = vmatprep.subr.mxu0 0.0
        %526 = vmatpush1.msra.mxu0 0.0
        %527 = vmatprep.subr.mxu0 0.0
        %528 = vmatpush1.msra.mxu0 0.0
        %529 = vmatprep.subr.mxu0 0.0
        %530 = vmatpush1.msra.mxu0 0.0
        %531 = vmatprep.subr.mxu0 0.0
        %532 = vmatpush1.msra.mxu0 0.0
        %533 = vmatprep.subr.mxu0 0.0
        %534 = vmatpush1.msra.mxu0 0.0
        %535 = vmatprep.subr.mxu0 0.0
        %536 = vmatpush1.msra.mxu0 0.0
        %537 = vmatprep.subr.mxu0 0.0
        %538 = vmatpush1.msra.mxu0 0.0
        %539 = vmatprep.subr.mxu0 0.0
        %540 = vmatpush1.msra.mxu0 0.0
        %541 = vmatprep.subr.mxu0 0.0
        %542 = vmatpush1.msra.mxu0 0.0
        %543 = vmatprep.subr.mxu0 0.0
        %544 = vmatpush1.msra.mxu0 0.0
        %545 = vmatprep.subr.mxu0 0.0
        %546 = vmatpush1.msra.mxu0 0.0
        %547 = vmatprep.subr.mxu0 0.0
        %548 = vmatpush1.msra.mxu0 0.0
        %549 = vmatprep.subr.mxu0 0.0
        %550 = vmatpush1.msra.mxu0 0.0
        %551 = vmatprep.subr.mxu0 0.0
        %552 = vmatpush1.msra.mxu0 0.0
        %553 = vmatprep.subr.mxu0 0.0
        %554 = vmatpush1.msra.mxu0 0.0
        %555 = vmatprep.subr.mxu0 0.0
        %556 = vmatpush1.msra.mxu0 0.0
        %557 = vmatprep.subr.mxu0 0.0
        %558 = vmatpush1.msra.mxu0 0.0
        %559 = vmatprep.subr.mxu0 0.0
        %560 = vmatpush1.msra.mxu0 0.0
        %561 = vmatprep.subr.mxu0 0.0
        %562 = vmatpush1.msra.mxu0 0.0
        %563 = vmatprep.subr.mxu0 0.0
        %564 = vmatpush1.msra.mxu0 0.0
        %565 = vmatprep.subr.mxu0 0.0
        %566 = vmatpush1.msra.mxu0 0.0
        %567 = vmatprep.subr.mxu0 0.0
        %568 = vmatpush1.msra.mxu0 0.0
        %569 = vmatprep.subr.mxu0 0.0
        %570 = vmatpush1.msra.mxu0 0.0
        %571 = vmatprep.subr.mxu0 0.0
        %572 = vmatpush1.msra.mxu0 0.0
        %573 = vmatprep.subr.mxu0 0.0
        %574 = vmatpush1.msra.mxu0 0.0
        %575 = vmatprep.subr.mxu0 0.0
        %576 = vmatpush1.msra.mxu0 0.0
        %577 = vmatprep.mubr.f32.mxu0 0.0
        %578 = vmatmul.mubr.f32.gmra.mrb[0].mxu0 %v440
        %v579 = vpop.f32.mrb[0].mxu0
        %v580 = vadd.f32 %v436, %v579
        %v581 = vpop.f32.mrb[0].mxu0
        %582 = vdwg.mxu0
        %s583 = scalar_lea.vmem [#allocation5], 8
        %v584 = vld [vmem:[%s583] sm:$0xf]
        %585 = vrot.lane.b32.xlu0 %v222, 126
        %v586 = vpop.permute.xlu0 %585
        %587 = vrot.lane.b32.xlu0 %v223, 126
        %v588 = vpop.permute.xlu0 %587
        %589 = vrot.lane.b32.xlu0 %v224, 126
        %v590 = vpop.permute.xlu0 %589
        %591 = vrot.lane.b32.xlu0 %v225, 126
        %v592 = vpop.permute.xlu0 %591
        %593 = vrot.lane.b32.xlu0 %v226, 126
        %v594 = vpop.permute.xlu0 %593
        %595 = vrot.lane.b32.xlu0 %v227, 126
        %v596 = vpop.permute.xlu0 %595
        %597 = vrot.lane.b32.xlu0 %v228, 126
        %v598 = vpop.permute.xlu0 %597
        %599 = vrot.lane.b32.xlu0 %v229, 126
        %v600 = vpop.permute.xlu0 %599
        %601 = vrot.lane.b32.xlu0 %v230, 126
        %v602 = vpop.permute.xlu0 %601
        %603 = vrot.lane.b32.xlu0 %v231, 126
        %v604 = vpop.permute.xlu0 %603
        %605 = vrot.lane.b32.xlu0 %v232, 126
        %v606 = vpop.permute.xlu0 %605
        %607 = vrot.lane.b32.xlu0 %v233, 126
        %v608 = vpop.permute.xlu0 %607
        %vm609 = vcmask 1031168
        %v610 = vsel %vm609, %v586, %v588
        %v611 = vsel %vm609, %v588, %v590
        %v612 = vsel %vm609, %v592, %v594
        %v613 = vsel %vm609, %v594, %v596
        %v614 = vsel %vm609, %v598, %v600
        %v615 = vsel %vm609, %v600, %v602
        %v616 = vsel %vm609, %v604, %v606
        %v617 = vsel %vm609, %v606, %v608
        %v631 = vsel %vm294, %v584, 0
        %633 = vmatprep.subr.mxu0 %v611
        %634 = vmatpush1.msra.mxu0 %v610
        %635 = vmatprep.subr.mxu0 %v613
        %636 = vmatpush1.msra.mxu0 %v612
        %637 = vmatprep.subr.mxu0 %v615
        %638 = vmatpush1.msra.mxu0 %v614
        %639 = vmatprep.subr.mxu0 %v617
        %640 = vmatpush1.msra.mxu0 %v616
        %641 = vmatprep.subr.mxu0 0.0
        %642 = vmatpush1.msra.mxu0 0.0
        %643 = vmatprep.subr.mxu0 0.0
        %644 = vmatpush1.msra.mxu0 0.0
        %645 = vmatprep.subr.mxu0 0.0
        %646 = vmatpush1.msra.mxu0 0.0
        %647 = vmatprep.subr.mxu0 0.0
        %648 = vmatpush1.msra.mxu0 0.0
        %649 = vmatprep.subr.mxu0 0.0
        %650 = vmatpush1.msra.mxu0 0.0
        %651 = vmatprep.subr.mxu0 0.0
        %652 = vmatpush1.msra.mxu0 0.0
        %653 = vmatprep.subr.mxu0 0.0
        %654 = vmatpush1.msra.mxu0 0.0
        %655 = vmatprep.subr.mxu0 0.0
        %656 = vmatpush1.msra.mxu0 0.0
        %657 = vmatprep.subr.mxu0 0.0
        %658 = vmatpush1.msra.mxu0 0.0
        %659 = vmatprep.subr.mxu0 0.0
        %660 = vmatpush1.msra.mxu0 0.0
        %661 = vmatprep.subr.mxu0 0.0
        %662 = vmatpush1.msra.mxu0 0.0
        %663 = vmatprep.subr.mxu0 0.0
        %664 = vmatpush1.msra.mxu0 0.0
        %665 = vmatprep.subr.mxu0 0.0
        %666 = vmatpush1.msra.mxu0 0.0
        %667 = vmatprep.subr.mxu0 0.0
        %668 = vmatpush1.msra.mxu0 0.0
        %669 = vmatprep.subr.mxu0 0.0
        %670 = vmatpush1.msra.mxu0 0.0
        %671 = vmatprep.subr.mxu0 0.0
        %672 = vmatpush1.msra.mxu0 0.0
        %673 = vmatprep.subr.mxu0 0.0
        %674 = vmatpush1.msra.mxu0 0.0
        %675 = vmatprep.subr.mxu0 0.0
        %676 = vmatpush1.msra.mxu0 0.0
        %677 = vmatprep.subr.mxu0 0.0
        %678 = vmatpush1.msra.mxu0 0.0
        %679 = vmatprep.subr.mxu0 0.0
        %680 = vmatpush1.msra.mxu0 0.0
        %681 = vmatprep.subr.mxu0 0.0
        %682 = vmatpush1.msra.mxu0 0.0
        %683 = vmatprep.subr.mxu0 0.0
        %684 = vmatpush1.msra.mxu0 0.0
        %685 = vmatprep.subr.mxu0 0.0
        %686 = vmatpush1.msra.mxu0 0.0
        %687 = vmatprep.subr.mxu0 0.0
        %688 = vmatpush1.msra.mxu0 0.0
        %689 = vmatprep.subr.mxu0 0.0
        %690 = vmatpush1.msra.mxu0 0.0
        %691 = vmatprep.subr.mxu0 0.0
        %692 = vmatpush1.msra.mxu0 0.0
        %693 = vmatprep.subr.mxu0 0.0
        %694 = vmatpush1.msra.mxu0 0.0
        %695 = vmatprep.subr.mxu0 0.0
        %696 = vmatpush1.msra.mxu0 0.0
        %697 = vmatprep.mubr.f32.mxu0 0.0
        %698 = vmatmul.mubr.f32.gmra.mrb[0].mxu0 %v631
        %v699 = vpop.f32.mrb[0].mxu0
        %v700 = vadd.f32 0.0, %v699
        %v701 = vpop.f32.mrb[0].mxu0
        %v702 = vadd.f32 0.0, %v701
        %703 = vdwg.mxu0
        %704 = vmatprep.subr.mxu0 0.0
        %705 = vmatpush1.msra.mxu0 %v590
        %706 = vmatprep.subr.mxu0 0.0
        %707 = vmatpush1.msra.mxu0 %v596
        %708 = vmatprep.subr.mxu0 0.0
        %709 = vmatpush1.msra.mxu0 %v602
        %710 = vmatprep.subr.mxu0 0.0
        %711 = vmatpush1.msra.mxu0 %v608
        %712 = vmatprep.subr.mxu0 0.0
        %713 = vmatpush1.msra.mxu0 0.0
        %714 = vmatprep.subr.mxu0 0.0
        %715 = vmatpush1.msra.mxu0 0.0
        %716 = vmatprep.subr.mxu0 0.0
        %717 = vmatpush1.msra.mxu0 0.0
        %718 = vmatprep.subr.mxu0 0.0
        %719 = vmatpush1.msra.mxu0 0.0
        %720 = vmatprep.subr.mxu0 0.0
        %721 = vmatpush1.msra.mxu0 0.0
        %722 = vmatprep.subr.mxu0 0.0
        %723 = vmatpush1.msra.mxu0 0.0
        %724 = vmatprep.subr.mxu0 0.0
        %725 = vmatpush1.msra.mxu0 0.0
        %726 = vmatprep.subr.mxu0 0.0
        %727 = vmatpush1.msra.mxu0 0.0
        %728 = vmatprep.subr.mxu0 0.0
        %729 = vmatpush1.msra.mxu0 0.0
        %730 = vmatprep.subr.mxu0 0.0
        %731 = vmatpush1.msra.mxu0 0.0
        %732 = vmatprep.subr.mxu0 0.0
        %733 = vmatpush1.msra.mxu0 0.0
        %734 = vmatprep.subr.mxu0 0.0
        %735 = vmatpush1.msra.mxu0 0.0
        %736 = vmatprep.subr.mxu0 0.0
        %737 = vmatpush1.msra.mxu0 0.0
        %738 = vmatprep.subr.mxu0 0.0
        %739 = vmatpush1.msra.mxu0 0.0
        %740 = vmatprep.subr.mxu0 0.0
        %741 = vmatpush1.msra.mxu0 0.0
        %742 = vmatprep.subr.mxu0 0.0
        %743 = vmatpush1.msra.mxu0 0.0
        %744 = vmatprep.subr.mxu0 0.0
        %745 = vmatpush1.msra.mxu0 0.0
        %746 = vmatprep.subr.mxu0 0.0
        %747 = vmatpush1.msra.mxu0 0.0
        %748 = vmatprep.subr.mxu0 0.0
        %749 = vmatpush1.msra.mxu0 0.0
        %750 = vmatprep.subr.mxu0 0.0
        %751 = vmatpush1.msra.mxu0 0.0
        %752 = vmatprep.subr.mxu0 0.0
        %753 = vmatpush1.msra.mxu0 0.0
        %754 = vmatprep.subr.mxu0 0.0
        %755 = vmatpush1.msra.mxu0 0.0
        %756 = vmatprep.subr.mxu0 0.0
        %757 = vmatpush1.msra.mxu0 0.0
        %758 = vmatprep.subr.mxu0 0.0
        %759 = vmatpush1.msra.mxu0 0.0
        %760 = vmatprep.subr.mxu0 0.0
        %761 = vmatpush1.msra.mxu0 0.0
        %762 = vmatprep.subr.mxu0 0.0
        %763 = vmatpush1.msra.mxu0 0.0
        %764 = vmatprep.subr.mxu0 0.0
        %765 = vmatpush1.msra.mxu0 0.0
        %766 = vmatprep.subr.mxu0 0.0
        %767 = vmatpush1.msra.mxu0 0.0
        %768 = vmatprep.mubr.f32.mxu0 0.0
        %769 = vmatmul.mubr.f32.gmra.mrb[0].mxu0 %v631
        %v770 = vpop.f32.mrb[0].mxu0
        %v771 = vadd.f32 0.0, %v770
        %v772 = vpop.f32.mrb[0].mxu0
        %773 = vdwg.mxu0
        %v774 = vadd.f32 %v509, %v700
        %v775 = vadd.f32 %v511, %v702
        %v776 = vadd.f32 %v580, %v771
        %s777 = scalar_lea.vmem [#allocation5], 12
        %v778 = vld [vmem:[%s777] sm:$0xf]
        %779 = vrot.lane.b32.xlu0 %v222, 110
        %v780 = vpop.permute.xlu0 %779
        %781 = vrot.lane.b32.xlu0 %v223, 110
        %v782 = vpop.permute.xlu0 %781
        %783 = vrot.lane.b32.xlu0 %v224, 110
        %v784 = vpop.permute.xlu0 %783
        %785 = vrot.lane.b32.xlu0 %v225, 110
        %v786 = vpop.permute.xlu0 %785
        %787 = vrot.lane.b32.xlu0 %v226, 110
        %v788 = vpop.permute.xlu0 %787
        %789 = vrot.lane.b32.xlu0 %v227, 110
        %v790 = vpop.permute.xlu0 %789
        %791 = vrot.lane.b32.xlu0 %v228, 110
        %v792 = vpop.permute.xlu0 %791
        %793 = vrot.lane.b32.xlu0 %v229, 110
        %v794 = vpop.permute.xlu0 %793
        %795 = vrot.lane.b32.xlu0 %v230, 110
        %v796 = vpop.permute.xlu0 %795
        %797 = vrot.lane.b32.xlu0 %v231, 110
        %v798 = vpop.permute.xlu0 %797
        %799 = vrot.lane.b32.xlu0 %v232, 110
        %v800 = vpop.permute.xlu0 %799
        %801 = vrot.lane.b32.xlu0 %v233, 110
        %v802 = vpop.permute.xlu0 %801
        %vm803 = vcmask 900096
        %v804 = vsel %vm803, %v780, %v782
        %v805 = vsel %vm803, %v782, %v784
        %v806 = vsel %vm803, %v786, %v788
        %v807 = vsel %vm803, %v788, %v790
        %v808 = vsel %vm803, %v792, %v794
        %v809 = vsel %vm803, %v794, %v796
        %v810 = vsel %vm803, %v798, %v800
        %v811 = vsel %vm803, %v800, %v802
        %v825 = vsel %vm294, %v778, 0
        %827 = vmatprep.subr.mxu0 %v805
        %828 = vmatpush1.msra.mxu0 %v804
        %829 = vmatprep.subr.mxu0 %v807
        %830 = vmatpush1.msra.mxu0 %v806
        %831 = vmatprep.subr.mxu0 %v809
        %832 = vmatpush1.msra.mxu0 %v808
        %833 = vmatprep.subr.mxu0 %v811
        %834 = vmatpush1.msra.mxu0 %v810
        %835 = vmatprep.subr.mxu0 0.0
        %836 = vmatpush1.msra.mxu0 0.0
        %837 = vmatprep.subr.mxu0 0.0
        %838 = vmatpush1.msra.mxu0 0.0
        %839 = vmatprep.subr.mxu0 0.0
        %840 = vmatpush1.msra.mxu0 0.0
        %841 = vmatprep.subr.mxu0 0.0
        %842 = vmatpush1.msra.mxu0 0.0
        %843 = vmatprep.subr.mxu0 0.0
        %844 = vmatpush1.msra.mxu0 0.0
        %845 = vmatprep.subr.mxu0 0.0
        %846 = vmatpush1.msra.mxu0 0.0
        %847 = vmatprep.subr.mxu0 0.0
        %848 = vmatpush1.msra.mxu0 0.0
        %849 = vmatprep.subr.mxu0 0.0
        %850 = vmatpush1.msra.mxu0 0.0
        %851 = vmatprep.subr.mxu0 0.0
        %852 = vmatpush1.msra.mxu0 0.0
        %853 = vmatprep.subr.mxu0 0.0
        %854 = vmatpush1.msra.mxu0 0.0
        %855 = vmatprep.subr.mxu0 0.0
        %856 = vmatpush1.msra.mxu0 0.0
        %857 = vmatprep.subr.mxu0 0.0
        %858 = vmatpush1.msra.mxu0 0.0
        %859 = vmatprep.subr.mxu0 0.0
        %860 = vmatpush1.msra.mxu0 0.0
        %861 = vmatprep.subr.mxu0 0.0
        %862 = vmatpush1.msra.mxu0 0.0
        %863 = vmatprep.subr.mxu0 0.0
        %864 = vmatpush1.msra.mxu0 0.0
        %865 = vmatprep.subr.mxu0 0.0
        %866 = vmatpush1.msra.mxu0 0.0
        %867 = vmatprep.subr.mxu0 0.0
        %868 = vmatpush1.msra.mxu0 0.0
        %869 = vmatprep.subr.mxu0 0.0
        %870 = vmatpush1.msra.mxu0 0.0
        %871 = vmatprep.subr.mxu0 0.0
        %872 = vmatpush1.msra.mxu0 0.0
        %873 = vmatprep.subr.mxu0 0.0
        %874 = vmatpush1.msra.mxu0 0.0
        %875 = vmatprep.subr.mxu0 0.0
        %876 = vmatpush1.msra.mxu0 0.0
        %877 = vmatprep.subr.mxu0 0.0
        %878 = vmatpush1.msra.mxu0 0.0
        %879 = vmatprep.subr.mxu0 0.0
        %880 = vmatpush1.msra.mxu0 0.0
        %881 = vmatprep.subr.mxu0 0.0
        %882 = vmatpush1.msra.mxu0 0.0
        %883 = vmatprep.subr.mxu0 0.0
        %884 = vmatpush1.msra.mxu0 0.0
        %885 = vmatprep.subr.mxu0 0.0
        %886 = vmatpush1.msra.mxu0 0.0
        %887 = vmatprep.subr.mxu0 0.0
        %888 = vmatpush1.msra.mxu0 0.0
        %889 = vmatprep.subr.mxu0 0.0
        %890 = vmatpush1.msra.mxu0 0.0
        %891 = vmatprep.mubr.f32.mxu0 0.0
        %892 = vmatmul.mubr.f32.gmra.mrb[0].mxu0 %v825
        %v893 = vpop.f32.mrb[0].mxu0
        %v894 = vadd.f32 0.0, %v893
        %v895 = vpop.f32.mrb[0].mxu0
        %v896 = vadd.f32 0.0, %v895
        %897 = vdwg.mxu0
        %898 = vmatprep.subr.mxu0 0.0
        %899 = vmatpush1.msra.mxu0 %v784
        %900 = vmatprep.subr.mxu0 0.0
        %901 = vmatpush1.msra.mxu0 %v790
        %902 = vmatprep.subr.mxu0 0.0
        %903 = vmatpush1.msra.mxu0 %v796
        %904 = vmatprep.subr.mxu0 0.0
        %905 = vmatpush1.msra.mxu0 %v802
        %906 = vmatprep.subr.mxu0 0.0
        %907 = vmatpush1.msra.mxu0 0.0
        %908 = vmatprep.subr.mxu0 0.0
        %909 = vmatpush1.msra.mxu0 0.0
        %910 = vmatprep.subr.mxu0 0.0
        %911 = vmatpush1.msra.mxu0 0.0
        %912 = vmatprep.subr.mxu0 0.0
        %913 = vmatpush1.msra.mxu0 0.0
        %914 = vmatprep.subr.mxu0 0.0
        %915 = vmatpush1.msra.mxu0 0.0
        %916 = vmatprep.subr.mxu0 0.0
        %917 = vmatpush1.msra.mxu0 0.0
        %918 = vmatprep.subr.mxu0 0.0
        %919 = vmatpush1.msra.mxu0 0.0
        %920 = vmatprep.subr.mxu0 0.0
        %921 = vmatpush1.msra.mxu0 0.0
        %922 = vmatprep.subr.mxu0 0.0
        %923 = vmatpush1.msra.mxu0 0.0
        %924 = vmatprep.subr.mxu0 0.0
        %925 = vmatpush1.msra.mxu0 0.0
        %926 = vmatprep.subr.mxu0 0.0
        %927 = vmatpush1.msra.mxu0 0.0
        %928 = vmatprep.subr.mxu0 0.0
        %929 = vmatpush1.msra.mxu0 0.0
        %930 = vmatprep.subr.mxu0 0.0
        %931 = vmatpush1.msra.mxu0 0.0
        %932 = vmatprep.subr.mxu0 0.0
        %933 = vmatpush1.msra.mxu0 0.0
        %934 = vmatprep.subr.mxu0 0.0
        %935 = vmatpush1.msra.mxu0 0.0
        %936 = vmatprep.subr.mxu0 0.0
        %937 = vmatpush1.msra.mxu0 0.0
        %938 = vmatprep.subr.mxu0 0.0
        %939 = vmatpush1.msra.mxu0 0.0
        %940 = vmatprep.subr.mxu0 0.0
        %941 = vmatpush1.msra.mxu0 0.0
        %942 = vmatprep.subr.mxu0 0.0
        %943 = vmatpush1.msra.mxu0 0.0
        %944 = vmatprep.subr.mxu0 0.0
        %945 = vmatpush1.msra.mxu0 0.0
        %946 = vmatprep.subr.mxu0 0.0
        %947 = vmatpush1.msra.mxu0 0.0
        %948 = vmatprep.subr.mxu0 0.0
        %949 = vmatpush1.msra.mxu0 0.0
        %950 = vmatprep.subr.mxu0 0.0
        %951 = vmatpush1.msra.mxu0 0.0
        %952 = vmatprep.subr.mxu0 0.0
        %953 = vmatpush1.msra.mxu0 0.0
        %954 = vmatprep.subr.mxu0 0.0
        %955 = vmatpush1.msra.mxu0 0.0
        %956 = vmatprep.subr.mxu0 0.0
        %957 = vmatpush1.msra.mxu0 0.0
        %958 = vmatprep.subr.mxu0 0.0
        %959 = vmatpush1.msra.mxu0 0.0
        %960 = vmatprep.subr.mxu0 0.0
        %961 = vmatpush1.msra.mxu0 0.0
        %962 = vmatprep.mubr.f32.mxu0 0.0
        %963 = vmatmul.mubr.f32.gmra.mrb[0].mxu0 %v825
        %v964 = vpop.f32.mrb[0].mxu0
        %v965 = vadd.f32 0.0, %v964
        %v966 = vpop.f32.mrb[0].mxu0
        %967 = vdwg.mxu0
        %v968 = vadd.f32 %v774, %v894
        %v969 = vadd.f32 %v775, %v896
        %v970 = vadd.f32 %v776, %v965
        %s971 = scalar_lea.vmem [#allocation5], 16
        %v972 = vld [vmem:[%s971] sm:$0xf]
        %973 = vrot.lane.b32.xlu0 %v222, 109
        %v974 = vpop.permute.xlu0 %973
        %975 = vrot.lane.b32.xlu0 %v223, 109
        %v976 = vpop.permute.xlu0 %975
        %977 = vrot.lane.b32.xlu0 %v224, 109
        %v978 = vpop.permute.xlu0 %977
        %979 = vrot.lane.b32.xlu0 %v225, 109
        %v980 = vpop.permute.xlu0 %979
        %981 = vrot.lane.b32.xlu0 %v226, 109
        %v982 = vpop.permute.xlu0 %981
        %983 = vrot.lane.b32.xlu0 %v227, 109
        %v984 = vpop.permute.xlu0 %983
        %985 = vrot.lane.b32.xlu0 %v228, 109
        %v986 = vpop.permute.xlu0 %985
        %987 = vrot.lane.b32.xlu0 %v229, 109
        %v988 = vpop.permute.xlu0 %987
        %989 = vrot.lane.b32.xlu0 %v230, 109
        %v990 = vpop.permute.xlu0 %989
        %991 = vrot.lane.b32.xlu0 %v231, 109
        %v992 = vpop.permute.xlu0 %991
        %993 = vrot.lane.b32.xlu0 %v232, 109
        %v994 = vpop.permute.xlu0 %993
        %995 = vrot.lane.b32.xlu0 %v233, 109
        %v996 = vpop.permute.xlu0 %995
        %vm997 = vcmask 891904
        %v998 = vsel %vm997, %v974, %v976
        %v999 = vsel %vm997, %v976, %v978
        %v1000 = vsel %vm997, %v980, %v982
        %v1001 = vsel %vm997, %v982, %v984
        %v1002 = vsel %vm997, %v986, %v988
        %v1003 = vsel %vm997, %v988, %v990
        %v1004 = vsel %vm997, %v992, %v994
        %v1005 = vsel %vm997, %v994, %v996
        %v1019 = vsel %vm294, %v972, 0
        %1021 = vmatprep.subr.mxu0 %v999
        %1022 = vmatpush1.msra.mxu0 %v998
        %1023 = vmatprep.subr.mxu0 %v1001
        %1024 = vmatpush1.msra.mxu0 %v1000
        %1025 = vmatprep.subr.mxu0 %v1003
        %1026 = vmatpush1.msra.mxu0 %v1002
        %1027 = vmatprep.subr.mxu0 %v1005
        %1028 = vmatpush1.msra.mxu0 %v1004
        %1029 = vmatprep.subr.mxu0 0.0
        %1030 = vmatpush1.msra.mxu0 0.0
        %1031 = vmatprep.subr.mxu0 0.0
        %1032 = vmatpush1.msra.mxu0 0.0
        %1033 = vmatprep.subr.mxu0 0.0
        %1034 = vmatpush1.msra.mxu0 0.0
        %1035 = vmatprep.subr.mxu0 0.0
        %1036 = vmatpush1.msra.mxu0 0.0
        %1037 = vmatprep.subr.mxu0 0.0
        %1038 = vmatpush1.msra.mxu0 0.0
        %1039 = vmatprep.subr.mxu0 0.0
        %1040 = vmatpush1.msra.mxu0 0.0
        %1041 = vmatprep.subr.mxu0 0.0
        %1042 = vmatpush1.msra.mxu0 0.0
        %1043 = vmatprep.subr.mxu0 0.0
        %1044 = vmatpush1.msra.mxu0 0.0
        %1045 = vmatprep.subr.mxu0 0.0
        %1046 = vmatpush1.msra.mxu0 0.0
        %1047 = vmatprep.subr.mxu0 0.0
        %1048 = vmatpush1.msra.mxu0 0.0
        %1049 = vmatprep.subr.mxu0 0.0
        %1050 = vmatpush1.msra.mxu0 0.0
        %1051 = vmatprep.subr.mxu0 0.0
        %1052 = vmatpush1.msra.mxu0 0.0
        %1053 = vmatprep.subr.mxu0 0.0
        %1054 = vmatpush1.msra.mxu0 0.0
        %1055 = vmatprep.subr.mxu0 0.0
        %1056 = vmatpush1.msra.mxu0 0.0
        %1057 = vmatprep.subr.mxu0 0.0
        %1058 = vmatpush1.msra.mxu0 0.0
        %1059 = vmatprep.subr.mxu0 0.0
        %1060 = vmatpush1.msra.mxu0 0.0
        %1061 = vmatprep.subr.mxu0 0.0
        %1062 = vmatpush1.msra.mxu0 0.0
        %1063 = vmatprep.subr.mxu0 0.0
        %1064 = vmatpush1.msra.mxu0 0.0
        %1065 = vmatprep.subr.mxu0 0.0
        %1066 = vmatpush1.msra.mxu0 0.0
        %1067 = vmatprep.subr.mxu0 0.0
        %1068 = vmatpush1.msra.mxu0 0.0
        %1069 = vmatprep.subr.mxu0 0.0
        %1070 = vmatpush1.msra.mxu0 0.0
        %1071 = vmatprep.subr.mxu0 0.0
        %1072 = vmatpush1.msra.mxu0 0.0
        %1073 = vmatprep.subr.mxu0 0.0
        %1074 = vmatpush1.msra.mxu0 0.0
        %1075 = vmatprep.subr.mxu0 0.0
        %1076 = vmatpush1.msra.mxu0 0.0
        %1077 = vmatprep.subr.mxu0 0.0
        %1078 = vmatpush1.msra.mxu0 0.0
        %1079 = vmatprep.subr.mxu0 0.0
        %1080 = vmatpush1.msra.mxu0 0.0
        %1081 = vmatprep.subr.mxu0 0.0
        %1082 = vmatpush1.msra.mxu0 0.0
        %1083 = vmatprep.subr.mxu0 0.0
        %1084 = vmatpush1.msra.mxu0 0.0
        %1085 = vmatprep.mubr.f32.mxu0 0.0
        %1086 = vmatmul.mubr.f32.gmra.mrb[0].mxu0 %v1019
        %v1087 = vpop.f32.mrb[0].mxu0
        %v1088 = vadd.f32 0.0, %v1087
        %v1089 = vpop.f32.mrb[0].mxu0
        %v1090 = vadd.f32 0.0, %v1089
        %1091 = vdwg.mxu0
        %1092 = vmatprep.subr.mxu0 0.0
        %1093 = vmatpush1.msra.mxu0 %v978
        %1094 = vmatprep.subr.mxu0 0.0
        %1095 = vmatpush1.msra.mxu0 %v984
        %1096 = vmatprep.subr.mxu0 0.0
        %1097 = vmatpush1.msra.mxu0 %v990
        %1098 = vmatprep.subr.mxu0 0.0
        %1099 = vmatpush1.msra.mxu0 %v996
        %1100 = vmatprep.subr.mxu0 0.0
        %1101 = vmatpush1.msra.mxu0 0.0
        %1102 = vmatprep.subr.mxu0 0.0
        %1103 = vmatpush1.msra.mxu0 0.0
        %1104 = vmatprep.subr.mxu0 0.0
        %1105 = vmatpush1.msra.mxu0 0.0
        %1106 = vmatprep.subr.mxu0 0.0
        %1107 = vmatpush1.msra.mxu0 0.0
        %1108 = vmatprep.subr.mxu0 0.0
        %1109 = vmatpush1.msra.mxu0 0.0
        %1110 = vmatprep.subr.mxu0 0.0
        %1111 = vmatpush1.msra.mxu0 0.0
        %1112 = vmatprep.subr.mxu0 0.0
        %1113 = vmatpush1.msra.mxu0 0.0
        %1114 = vmatprep.subr.mxu0 0.0
        %1115 = vmatpush1.msra.mxu0 0.0
        %1116 = vmatprep.subr.mxu0 0.0
        %1117 = vmatpush1.msra.mxu0 0.0
        %1118 = vmatprep.subr.mxu0 0.0
        %1119 = vmatpush1.msra.mxu0 0.0
        %1120 = vmatprep.subr.mxu0 0.0
        %1121 = vmatpush1.msra.mxu0 0.0
        %1122 = vmatprep.subr.mxu0 0.0
        %1123 = vmatpush1.msra.mxu0 0.0
        %1124 = vmatprep.subr.mxu0 0.0
        %1125 = vmatpush1.msra.mxu0 0.0
        %1126 = vmatprep.subr.mxu0 0.0
        %1127 = vmatpush1.msra.mxu0 0.0
        %1128 = vmatprep.subr.mxu0 0.0
        %1129 = vmatpush1.msra.mxu0 0.0
        %1130 = vmatprep.subr.mxu0 0.0
        %1131 = vmatpush1.msra.mxu0 0.0
        %1132 = vmatprep.subr.mxu0 0.0
        %1133 = vmatpush1.msra.mxu0 0.0
        %1134 = vmatprep.subr.mxu0 0.0
        %1135 = vmatpush1.msra.mxu0 0.0
        %1136 = vmatprep.subr.mxu0 0.0
        %1137 = vmatpush1.msra.mxu0 0.0
        %1138 = vmatprep.subr.mxu0 0.0
        %1139 = vmatpush1.msra.mxu0 0.0
        %1140 = vmatprep.subr.mxu0 0.0
        %1141 = vmatpush1.msra.mxu0 0.0
        %1142 = vmatprep.subr.mxu0 0.0
        %1143 = vmatpush1.msra.mxu0 0.0
        %1144 = vmatprep.subr.mxu0 0.0
        %1145 = vmatpush1.msra.mxu0 0.0
        %1146 = vmatprep.subr.mxu0 0.0
        %1147 = vmatpush1.msra.mxu0 0.0
        %1148 = vmatprep.subr.mxu0 0.0
        %1149 = vmatpush1.msra.mxu0 0.0
        %1150 = vmatprep.subr.mxu0 0.0
        %1151 = vmatpush1.msra.mxu0 0.0
        %1152 = vmatprep.subr.mxu0 0.0
        %1153 = vmatpush1.msra.mxu0 0.0
        %1154 = vmatprep.subr.mxu0 0.0
        %1155 = vmatpush1.msra.mxu0 0.0
        %1156 = vmatprep.mubr.f32.mxu0 0.0
        %1157 = vmatmul.mubr.f32.gmra.mrb[0].mxu0 %v1019
        %v1158 = vpop.f32.mrb[0].mxu0
        %v1159 = vadd.f32 0.0, %v1158
        %v1160 = vpop.f32.mrb[0].mxu0
        %1161 = vdwg.mxu0
        %v1162 = vadd.f32 %v968, %v1088
        %v1163 = vadd.f32 %v969, %v1090
        %v1164 = vadd.f32 %v970, %v1159
        %s1165 = scalar_lea.vmem [#allocation5], 20
        %v1166 = vld [vmem:[%s1165] sm:$0xf]
        %1167 = vrot.lane.b32.xlu0 %v222, 108
        %v1168 = vpop.permute.xlu0 %1167
        %1169 = vrot.lane.b32.xlu0 %v223, 108
        %v1170 = vpop.permute.xlu0 %1169
        %1171 = vrot.lane.b32.xlu0 %v224, 108
        %v1172 = vpop.permute.xlu0 %1171
        %1173 = vrot.lane.b32.xlu0 %v225, 108
        %v1174 = vpop.permute.xlu0 %1173
        %1175 = vrot.lane.b32.xlu0 %v226, 108
        %v1176 = vpop.permute.xlu0 %1175
        %1177 = vrot.lane.b32.xlu0 %v227, 108
        %v1178 = vpop.permute.xlu0 %1177
        %1179 = vrot.lane.b32.xlu0 %v228, 108
        %v1180 = vpop.permute.xlu0 %1179
        %1181 = vrot.lane.b32.xlu0 %v229, 108
        %v1182 = vpop.permute.xlu0 %1181
        %1183 = vrot.lane.b32.xlu0 %v230, 108
        %v1184 = vpop.permute.xlu0 %1183
        %1185 = vrot.lane.b32.xlu0 %v231, 108
        %v1186 = vpop.permute.xlu0 %1185
        %1187 = vrot.lane.b32.xlu0 %v232, 108
        %v1188 = vpop.permute.xlu0 %1187
        %1189 = vrot.lane.b32.xlu0 %v233, 108
        %v1190 = vpop.permute.xlu0 %1189
        %vm1191 = vcmask 883712
        %v1192 = vsel %vm1191, %v1168, %v1170
        %v1193 = vsel %vm1191, %v1170, %v1172
        %v1194 = vsel %vm1191, %v1174, %v1176
        %v1195 = vsel %vm1191, %v1176, %v1178
        %v1196 = vsel %vm1191, %v1180, %v1182
        %v1197 = vsel %vm1191, %v1182, %v1184
        %v1198 = vsel %vm1191, %v1186, %v1188
        %v1199 = vsel %vm1191, %v1188, %v1190
        %v1213 = vsel %vm294, %v1166, 0
        %1215 = vmatprep.subr.mxu0 %v1193
        %1216 = vmatpush1.msra.mxu0 %v1192
        %1217 = vmatprep.subr.mxu0 %v1195
        %1218 = vmatpush1.msra.mxu0 %v1194
        %1219 = vmatprep.subr.mxu0 %v1197
        %1220 = vmatpush1.msra.mxu0 %v1196
        %1221 = vmatprep.subr.mxu0 %v1199
        %1222 = vmatpush1.msra.mxu0 %v1198
        %1223 = vmatprep.subr.mxu0 0.0
        %1224 = vmatpush1.msra.mxu0 0.0
        %1225 = vmatprep.subr.mxu0 0.0
        %1226 = vmatpush1.msra.mxu0 0.0
        %1227 = vmatprep.subr.mxu0 0.0
        %1228 = vmatpush1.msra.mxu0 0.0
        %1229 = vmatprep.subr.mxu0 0.0
        %1230 = vmatpush1.msra.mxu0 0.0
        %1231 = vmatprep.subr.mxu0 0.0
        %1232 = vmatpush1.msra.mxu0 0.0
        %1233 = vmatprep.subr.mxu0 0.0
        %1234 = vmatpush1.msra.mxu0 0.0
        %1235 = vmatprep.subr.mxu0 0.0
        %1236 = vmatpush1.msra.mxu0 0.0
        %1237 = vmatprep.subr.mxu0 0.0
        %1238 = vmatpush1.msra.mxu0 0.0
        %1239 = vmatprep.subr.mxu0 0.0
        %1240 = vmatpush1.msra.mxu0 0.0
        %1241 = vmatprep.subr.mxu0 0.0
        %1242 = vmatpush1.msra.mxu0 0.0
        %1243 = vmatprep.subr.mxu0 0.0
        %1244 = vmatpush1.msra.mxu0 0.0
        %1245 = vmatprep.subr.mxu0 0.0
        %1246 = vmatpush1.msra.mxu0 0.0
        %1247 = vmatprep.subr.mxu0 0.0
        %1248 = vmatpush1.msra.mxu0 0.0
        %1249 = vmatprep.subr.mxu0 0.0
        %1250 = vmatpush1.msra.mxu0 0.0
        %1251 = vmatprep.subr.mxu0 0.0
        %1252 = vmatpush1.msra.mxu0 0.0
        %1253 = vmatprep.subr.mxu0 0.0
        %1254 = vmatpush1.msra.mxu0 0.0
        %1255 = vmatprep.subr.mxu0 0.0
        %1256 = vmatpush1.msra.mxu0 0.0
        %1257 = vmatprep.subr.mxu0 0.0
        %1258 = vmatpush1.msra.mxu0 0.0
        %1259 = vmatprep.subr.mxu0 0.0
        %1260 = vmatpush1.msra.mxu0 0.0
        %1261 = vmatprep.subr.mxu0 0.0
        %1262 = vmatpush1.msra.mxu0 0.0
        %1263 = vmatprep.subr.mxu0 0.0
        %1264 = vmatpush1.msra.mxu0 0.0
        %1265 = vmatprep.subr.mxu0 0.0
        %1266 = vmatpush1.msra.mxu0 0.0
        %1267 = vmatprep.subr.mxu0 0.0
        %1268 = vmatpush1.msra.mxu0 0.0
        %1269 = vmatprep.subr.mxu0 0.0
        %1270 = vmatpush1.msra.mxu0 0.0
        %1271 = vmatprep.subr.mxu0 0.0
        %1272 = vmatpush1.msra.mxu0 0.0
        %1273 = vmatprep.subr.mxu0 0.0
        %1274 = vmatpush1.msra.mxu0 0.0
        %1275 = vmatprep.subr.mxu0 0.0
        %1276 = vmatpush1.msra.mxu0 0.0
        %1277 = vmatprep.subr.mxu0 0.0
        %1278 = vmatpush1.msra.mxu0 0.0
        %1279 = vmatprep.mubr.f32.mxu0 0.0
        %1280 = vmatmul.mubr.f32.gmra.mrb[0].mxu0 %v1213
        %v1281 = vpop.f32.mrb[0].mxu0
        %v1282 = vadd.f32 0.0, %v1281
        %v1283 = vpop.f32.mrb[0].mxu0
        %v1284 = vadd.f32 0.0, %v1283
        %1285 = vdwg.mxu0
        %1286 = vmatprep.subr.mxu0 0.0
        %1287 = vmatpush1.msra.mxu0 %v1172
        %1288 = vmatprep.subr.mxu0 0.0
        %1289 = vmatpush1.msra.mxu0 %v1178
        %1290 = vmatprep.subr.mxu0 0.0
        %1291 = vmatpush1.msra.mxu0 %v1184
        %1292 = vmatprep.subr.mxu0 0.0
        %1293 = vmatpush1.msra.mxu0 %v1190
        %1294 = vmatprep.subr.mxu0 0.0
        %1295 = vmatpush1.msra.mxu0 0.0
        %1296 = vmatprep.subr.mxu0 0.0
        %1297 = vmatpush1.msra.mxu0 0.0
        %1298 = vmatprep.subr.mxu0 0.0
        %1299 = vmatpush1.msra.mxu0 0.0
        %1300 = vmatprep.subr.mxu0 0.0
        %1301 = vmatpush1.msra.mxu0 0.0
        %1302 = vmatprep.subr.mxu0 0.0
        %1303 = vmatpush1.msra.mxu0 0.0
        %1304 = vmatprep.subr.mxu0 0.0
        %1305 = vmatpush1.msra.mxu0 0.0
        %1306 = vmatprep.subr.mxu0 0.0
        %1307 = vmatpush1.msra.mxu0 0.0
        %1308 = vmatprep.subr.mxu0 0.0
        %1309 = vmatpush1.msra.mxu0 0.0
        %1310 = vmatprep.subr.mxu0 0.0
        %1311 = vmatpush1.msra.mxu0 0.0
        %1312 = vmatprep.subr.mxu0 0.0
        %1313 = vmatpush1.msra.mxu0 0.0
        %1314 = vmatprep.subr.mxu0 0.0
        %1315 = vmatpush1.msra.mxu0 0.0
        %1316 = vmatprep.subr.mxu0 0.0
        %1317 = vmatpush1.msra.mxu0 0.0
        %1318 = vmatprep.subr.mxu0 0.0
        %1319 = vmatpush1.msra.mxu0 0.0
        %1320 = vmatprep.subr.mxu0 0.0
        %1321 = vmatpush1.msra.mxu0 0.0
        %1322 = vmatprep.subr.mxu0 0.0
        %1323 = vmatpush1.msra.mxu0 0.0
        %1324 = vmatprep.subr.mxu0 0.0
        %1325 = vmatpush1.msra.mxu0 0.0
        %1326 = vmatprep.subr.mxu0 0.0
        %1327 = vmatpush1.msra.mxu0 0.0
        %1328 = vmatprep.subr.mxu0 0.0
        %1329 = vmatpush1.msra.mxu0 0.0
        %1330 = vmatprep.subr.mxu0 0.0
        %1331 = vmatpush1.msra.mxu0 0.0
        %1332 = vmatprep.subr.mxu0 0.0
        %1333 = vmatpush1.msra.mxu0 0.0
        %1334 = vmatprep.subr.mxu0 0.0
        %1335 = vmatpush1.msra.mxu0 0.0
        %1336 = vmatprep.subr.mxu0 0.0
        %1337 = vmatpush1.msra.mxu0 0.0
        %1338 = vmatprep.subr.mxu0 0.0
        %1339 = vmatpush1.msra.mxu0 0.0
        %1340 = vmatprep.subr.mxu0 0.0
        %1341 = vmatpush1.msra.mxu0 0.0
        %1342 = vmatprep.subr.mxu0 0.0
        %1343 = vmatpush1.msra.mxu0 0.0
        %1344 = vmatprep.subr.mxu0 0.0
        %1345 = vmatpush1.msra.mxu0 0.0
        %1346 = vmatprep.subr.mxu0 0.0
        %1347 = vmatpush1.msra.mxu0 0.0
        %1348 = vmatprep.subr.mxu0 0.0
        %1349 = vmatpush1.msra.mxu0 0.0
        %1350 = vmatprep.mubr.f32.mxu0 0.0
        %1351 = vmatmul.mubr.f32.gmra.mrb[0].mxu0 %v1213
        %v1352 = vpop.f32.mrb[0].mxu0
        %v1353 = vadd.f32 0.0, %v1352
        %v1354 = vpop.f32.mrb[0].mxu0
        %1355 = vdwg.mxu0
        %v1356 = vadd.f32 %v1162, %v1282
        %v1357 = vadd.f32 %v1163, %v1284
        %v1358 = vadd.f32 %v1164, %v1353
        %s1359 = scalar_lea.vmem [#allocation5], 24
        %v1360 = vld [vmem:[%s1359] sm:$0xf]
        %1361 = vrot.lane.b32.xlu0 %v222, 92
        %v1362 = vpop.permute.xlu0 %1361
        %1363 = vrot.lane.b32.xlu0 %v223, 92
        %v1364 = vpop.permute.xlu0 %1363
        %1365 = vrot.lane.b32.xlu0 %v224, 92
        %v1366 = vpop.permute.xlu0 %1365
        %1367 = vrot.lane.b32.xlu0 %v225, 92
        %v1368 = vpop.permute.xlu0 %1367
        %1369 = vrot.lane.b32.xlu0 %v226, 92
        %v1370 = vpop.permute.xlu0 %1369
        %1371 = vrot.lane.b32.xlu0 %v227, 92
        %v1372 = vpop.permute.xlu0 %1371
        %1373 = vrot.lane.b32.xlu0 %v228, 92
        %v1374 = vpop.permute.xlu0 %1373
        %1375 = vrot.lane.b32.xlu0 %v229, 92
        %v1376 = vpop.permute.xlu0 %1375
        %1377 = vrot.lane.b32.xlu0 %v230, 92
        %v1378 = vpop.permute.xlu0 %1377
        %1379 = vrot.lane.b32.xlu0 %v231, 92
        %v1380 = vpop.permute.xlu0 %1379
        %1381 = vrot.lane.b32.xlu0 %v232, 92
        %v1382 = vpop.permute.xlu0 %1381
        %1383 = vrot.lane.b32.xlu0 %v233, 92
        %v1384 = vpop.permute.xlu0 %1383
        %vm1385 = vcmask 752640
        %v1386 = vsel %vm1385, %v1362, %v1364
        %v1387 = vsel %vm1385, %v1364, %v1366
        %v1388 = vsel %vm1385, %v1368, %v1370
        %v1389 = vsel %vm1385, %v1370, %v1372
        %v1390 = vsel %vm1385, %v1374, %v1376
        %v1391 = vsel %vm1385, %v1376, %v1378
        %v1392 = vsel %vm1385, %v1380, %v1382
        %v1393 = vsel %vm1385, %v1382, %v1384
        %v1407 = vsel %vm294, %v1360, 0
        %1409 = vmatprep.subr.mxu0 %v1387
        %1410 = vmatpush1.msra.mxu0 %v1386
        %1411 = vmatprep.subr.mxu0 %v1389
        %1412 = vmatpush1.msra.mxu0 %v1388
        %1413 = vmatprep.subr.mxu0 %v1391
        %1414 = vmatpush1.msra.mxu0 %v1390
        %1415 = vmatprep.subr.mxu0 %v1393
        %1416 = vmatpush1.msra.mxu0 %v1392
        %1417 = vmatprep.subr.mxu0 0.0
        %1418 = vmatpush1.msra.mxu0 0.0
        %1419 = vmatprep.subr.mxu0 0.0
        %1420 = vmatpush1.msra.mxu0 0.0
        %1421 = vmatprep.subr.mxu0 0.0
        %1422 = vmatpush1.msra.mxu0 0.0
        %1423 = vmatprep.subr.mxu0 0.0
        %1424 = vmatpush1.msra.mxu0 0.0
        %1425 = vmatprep.subr.mxu0 0.0
        %1426 = vmatpush1.msra.mxu0 0.0
        %1427 = vmatprep.subr.mxu0 0.0
        %1428 = vmatpush1.msra.mxu0 0.0
        %1429 = vmatprep.subr.mxu0 0.0
        %1430 = vmatpush1.msra.mxu0 0.0
        %1431 = vmatprep.subr.mxu0 0.0
        %1432 = vmatpush1.msra.mxu0 0.0
        %1433 = vmatprep.subr.mxu0 0.0
        %1434 = vmatpush1.msra.mxu0 0.0
        %1435 = vmatprep.subr.mxu0 0.0
        %1436 = vmatpush1.msra.mxu0 0.0
        %1437 = vmatprep.subr.mxu0 0.0
        %1438 = vmatpush1.msra.mxu0 0.0
        %1439 = vmatprep.subr.mxu0 0.0
        %1440 = vmatpush1.msra.mxu0 0.0
        %1441 = vmatprep.subr.mxu0 0.0
        %1442 = vmatpush1.msra.mxu0 0.0
        %1443 = vmatprep.subr.mxu0 0.0
        %1444 = vmatpush1.msra.mxu0 0.0
        %1445 = vmatprep.subr.mxu0 0.0
        %1446 = vmatpush1.msra.mxu0 0.0
        %1447 = vmatprep.subr.mxu0 0.0
        %1448 = vmatpush1.msra.mxu0 0.0
        %1449 = vmatprep.subr.mxu0 0.0
        %1450 = vmatpush1.msra.mxu0 0.0
        %1451 = vmatprep.subr.mxu0 0.0
        %1452 = vmatpush1.msra.mxu0 0.0
        %1453 = vmatprep.subr.mxu0 0.0
        %1454 = vmatpush1.msra.mxu0 0.0
        %1455 = vmatprep.subr.mxu0 0.0
        %1456 = vmatpush1.msra.mxu0 0.0
        %1457 = vmatprep.subr.mxu0 0.0
        %1458 = vmatpush1.msra.mxu0 0.0
        %1459 = vmatprep.subr.mxu0 0.0
        %1460 = vmatpush1.msra.mxu0 0.0
        %1461 = vmatprep.subr.mxu0 0.0
        %1462 = vmatpush1.msra.mxu0 0.0
        %1463 = vmatprep.subr.mxu0 0.0
        %1464 = vmatpush1.msra.mxu0 0.0
        %1465 = vmatprep.subr.mxu0 0.0
        %1466 = vmatpush1.msra.mxu0 0.0
        %1467 = vmatprep.subr.mxu0 0.0
        %1468 = vmatpush1.msra.mxu0 0.0
        %1469 = vmatprep.subr.mxu0 0.0
        %1470 = vmatpush1.msra.mxu0 0.0
        %1471 = vmatprep.subr.mxu0 0.0
        %1472 = vmatpush1.msra.mxu0 0.0
        %1473 = vmatprep.mubr.f32.mxu0 0.0
        %1474 = vmatmul.mubr.f32.gmra.mrb[0].mxu0 %v1407
        %v1475 = vpop.f32.mrb[0].mxu0
        %v1476 = vadd.f32 0.0, %v1475
        %v1477 = vpop.f32.mrb[0].mxu0
        %v1478 = vadd.f32 0.0, %v1477
        %1479 = vdwg.mxu0
        %1480 = vmatprep.subr.mxu0 0.0
        %1481 = vmatpush1.msra.mxu0 %v1366
        %1482 = vmatprep.subr.mxu0 0.0
        %1483 = vmatpush1.msra.mxu0 %v1372
        %1484 = vmatprep.subr.mxu0 0.0
        %1485 = vmatpush1.msra.mxu0 %v1378
        %1486 = vmatprep.subr.mxu0 0.0
        %1487 = vmatpush1.msra.mxu0 %v1384
        %1488 = vmatprep.subr.mxu0 0.0
        %1489 = vmatpush1.msra.mxu0 0.0
        %1490 = vmatprep.subr.mxu0 0.0
        %1491 = vmatpush1.msra.mxu0 0.0
        %1492 = vmatprep.subr.mxu0 0.0
        %1493 = vmatpush1.msra.mxu0 0.0
        %1494 = vmatprep.subr.mxu0 0.0
        %1495 = vmatpush1.msra.mxu0 0.0
        %1496 = vmatprep.subr.mxu0 0.0
        %1497 = vmatpush1.msra.mxu0 0.0
        %1498 = vmatprep.subr.mxu0 0.0
        %1499 = vmatpush1.msra.mxu0 0.0
        %1500 = vmatprep.subr.mxu0 0.0
        %1501 = vmatpush1.msra.mxu0 0.0
        %1502 = vmatprep.subr.mxu0 0.0
        %1503 = vmatpush1.msra.mxu0 0.0
        %1504 = vmatprep.subr.mxu0 0.0
        %1505 = vmatpush1.msra.mxu0 0.0
        %1506 = vmatprep.subr.mxu0 0.0
        %1507 = vmatpush1.msra.mxu0 0.0
        %1508 = vmatprep.subr.mxu0 0.0
        %1509 = vmatpush1.msra.mxu0 0.0
        %1510 = vmatprep.subr.mxu0 0.0
        %1511 = vmatpush1.msra.mxu0 0.0
        %1512 = vmatprep.subr.mxu0 0.0
        %1513 = vmatpush1.msra.mxu0 0.0
        %1514 = vmatprep.subr.mxu0 0.0
        %1515 = vmatpush1.msra.mxu0 0.0
        %1516 = vmatprep.subr.mxu0 0.0
        %1517 = vmatpush1.msra.mxu0 0.0
        %1518 = vmatprep.subr.mxu0 0.0
        %1519 = vmatpush1.msra.mxu0 0.0
        %1520 = vmatprep.subr.mxu0 0.0
        %1521 = vmatpush1.msra.mxu0 0.0
        %1522 = vmatprep.subr.mxu0 0.0
        %1523 = vmatpush1.msra.mxu0 0.0
        %1524 = vmatprep.subr.mxu0 0.0
        %1525 = vmatpush1.msra.mxu0 0.0
        %1526 = vmatprep.subr.mxu0 0.0
        %1527 = vmatpush1.msra.mxu0 0.0
        %1528 = vmatprep.subr.mxu0 0.0
        %1529 = vmatpush1.msra.mxu0 0.0
        %1530 = vmatprep.subr.mxu0 0.0
        %1531 = vmatpush1.msra.mxu0 0.0
        %1532 = vmatprep.subr.mxu0 0.0
        %1533 = vmatpush1.msra.mxu0 0.0
        %1534 = vmatprep.subr.mxu0 0.0
        %1535 = vmatpush1.msra.mxu0 0.0
        %1536 = vmatprep.subr.mxu0 0.0
        %1537 = vmatpush1.msra.mxu0 0.0
        %1538 = vmatprep.subr.mxu0 0.0
        %1539 = vmatpush1.msra.mxu0 0.0
        %1540 = vmatprep.subr.mxu0 0.0
        %1541 = vmatpush1.msra.mxu0 0.0
        %1542 = vmatprep.subr.mxu0 0.0
        %1543 = vmatpush1.msra.mxu0 0.0
        %1544 = vmatprep.mubr.f32.mxu0 0.0
        %1545 = vmatmul.mubr.f32.gmra.mrb[0].mxu0 %v1407
        %v1546 = vpop.f32.mrb[0].mxu0
        %v1547 = vadd.f32 0.0, %v1546
        %v1548 = vpop.f32.mrb[0].mxu0
        %1549 = vdwg.mxu0
        %v1550 = vadd.f32 %v1356, %v1476
        %v1551 = vadd.f32 %v1357, %v1478
        %v1552 = vadd.f32 %v1358, %v1547
        %s1553 = scalar_lea.vmem [#allocation5], 28
        %v1554 = vld [vmem:[%s1553] sm:$0xf]
        %1555 = vrot.lane.b32.xlu0 %v222, 91
        %v1556 = vpop.permute.xlu0 %1555
        %1557 = vrot.lane.b32.xlu0 %v223, 91
        %v1558 = vpop.permute.xlu0 %1557
        %1559 = vrot.lane.b32.xlu0 %v224, 91
        %v1560 = vpop.permute.xlu0 %1559
        %1561 = vrot.lane.b32.xlu0 %v225, 91
        %v1562 = vpop.permute.xlu0 %1561
        %1563 = vrot.lane.b32.xlu0 %v226, 91
        %v1564 = vpop.permute.xlu0 %1563
        %1565 = vrot.lane.b32.xlu0 %v227, 91
        %v1566 = vpop.permute.xlu0 %1565
        %1567 = vrot.lane.b32.xlu0 %v228, 91
        %v1568 = vpop.permute.xlu0 %1567
        %1569 = vrot.lane.b32.xlu0 %v229, 91
        %v1570 = vpop.permute.xlu0 %1569
        %1571 = vrot.lane.b32.xlu0 %v230, 91
        %v1572 = vpop.permute.xlu0 %1571
        %1573 = vrot.lane.b32.xlu0 %v231, 91
        %v1574 = vpop.permute.xlu0 %1573
        %1575 = vrot.lane.b32.xlu0 %v232, 91
        %v1576 = vpop.permute.xlu0 %1575
        %1577 = vrot.lane.b32.xlu0 %v233, 91
        %v1578 = vpop.permute.xlu0 %1577
        %vm1579 = vcmask 744448
        %v1580 = vsel %vm1579, %v1556, %v1558
        %v1581 = vsel %vm1579, %v1558, %v1560
        %v1582 = vsel %vm1579, %v1562, %v1564
        %v1583 = vsel %vm1579, %v1564, %v1566
        %v1584 = vsel %vm1579, %v1568, %v1570
        %v1585 = vsel %vm1579, %v1570, %v1572
        %v1586 = vsel %vm1579, %v1574, %v1576
        %v1587 = vsel %vm1579, %v1576, %v1578
        %v1601 = vsel %vm294, %v1554, 0
        %1603 = vmatprep.subr.mxu0 %v1581
        %1604 = vmatpush1.msra.mxu0 %v1580
        %1605 = vmatprep.subr.mxu0 %v1583
        %1606 = vmatpush1.msra.mxu0 %v1582
        %1607 = vmatprep.subr.mxu0 %v1585
        %1608 = vmatpush1.msra.mxu0 %v1584
        %1609 = vmatprep.subr.mxu0 %v1587
        %1610 = vmatpush1.msra.mxu0 %v1586
        %1611 = vmatprep.subr.mxu0 0.0
        %1612 = vmatpush1.msra.mxu0 0.0
        %1613 = vmatprep.subr.mxu0 0.0
        %1614 = vmatpush1.msra.mxu0 0.0
        %1615 = vmatprep.subr.mxu0 0.0
        %1616 = vmatpush1.msra.mxu0 0.0
        %1617 = vmatprep.subr.mxu0 0.0
        %1618 = vmatpush1.msra.mxu0 0.0
        %1619 = vmatprep.subr.mxu0 0.0
        %1620 = vmatpush1.msra.mxu0 0.0
        %1621 = vmatprep.subr.mxu0 0.0
        %1622 = vmatpush1.msra.mxu0 0.0
        %1623 = vmatprep.subr.mxu0 0.0
        %1624 = vmatpush1.msra.mxu0 0.0
        %1625 = vmatprep.subr.mxu0 0.0
        %1626 = vmatpush1.msra.mxu0 0.0
        %1627 = vmatprep.subr.mxu0 0.0
        %1628 = vmatpush1.msra.mxu0 0.0
        %1629 = vmatprep.subr.mxu0 0.0
        %1630 = vmatpush1.msra.mxu0 0.0
        %1631 = vmatprep.subr.mxu0 0.0
        %1632 = vmatpush1.msra.mxu0 0.0
        %1633 = vmatprep.subr.mxu0 0.0
        %1634 = vmatpush1.msra.mxu0 0.0
        %1635 = vmatprep.subr.mxu0 0.0
        %1636 = vmatpush1.msra.mxu0 0.0
        %1637 = vmatprep.subr.mxu0 0.0
        %1638 = vmatpush1.msra.mxu0 0.0
        %1639 = vmatprep.subr.mxu0 0.0
        %1640 = vmatpush1.msra.mxu0 0.0
        %1641 = vmatprep.subr.mxu0 0.0
        %1642 = vmatpush1.msra.mxu0 0.0
        %1643 = vmatprep.subr.mxu0 0.0
        %1644 = vmatpush1.msra.mxu0 0.0
        %1645 = vmatprep.subr.mxu0 0.0
        %1646 = vmatpush1.msra.mxu0 0.0
        %1647 = vmatprep.subr.mxu0 0.0
        %1648 = vmatpush1.msra.mxu0 0.0
        %1649 = vmatprep.subr.mxu0 0.0
        %1650 = vmatpush1.msra.mxu0 0.0
        %1651 = vmatprep.subr.mxu0 0.0
        %1652 = vmatpush1.msra.mxu0 0.0
        %1653 = vmatprep.subr.mxu0 0.0
        %1654 = vmatpush1.msra.mxu0 0.0
        %1655 = vmatprep.subr.mxu0 0.0
        %1656 = vmatpush1.msra.mxu0 0.0
        %1657 = vmatprep.subr.mxu0 0.0
        %1658 = vmatpush1.msra.mxu0 0.0
        %1659 = vmatprep.subr.mxu0 0.0
        %1660 = vmatpush1.msra.mxu0 0.0
        %1661 = vmatprep.subr.mxu0 0.0
        %1662 = vmatpush1.msra.mxu0 0.0
        %1663 = vmatprep.subr.mxu0 0.0
        %1664 = vmatpush1.msra.mxu0 0.0
        %1665 = vmatprep.subr.mxu0 0.0
        %1666 = vmatpush1.msra.mxu0 0.0
        %1667 = vmatprep.mubr.f32.mxu0 0.0
        %1668 = vmatmul.mubr.f32.gmra.mrb[0].mxu0 %v1601
        %v1669 = vpop.f32.mrb[0].mxu0
        %v1670 = vadd.f32 0.0, %v1669
        %v1671 = vpop.f32.mrb[0].mxu0
        %v1672 = vadd.f32 0.0, %v1671
        %1673 = vdwg.mxu0
        %1674 = vmatprep.subr.mxu0 0.0
        %1675 = vmatpush1.msra.mxu0 %v1560
        %1676 = vmatprep.subr.mxu0 0.0
        %1677 = vmatpush1.msra.mxu0 %v1566
        %1678 = vmatprep.subr.mxu0 0.0
        %1679 = vmatpush1.msra.mxu0 %v1572
        %1680 = vmatprep.subr.mxu0 0.0
        %1681 = vmatpush1.msra.mxu0 %v1578
        %1682 = vmatprep.subr.mxu0 0.0
        %1683 = vmatpush1.msra.mxu0 0.0
        %1684 = vmatprep.subr.mxu0 0.0
        %1685 = vmatpush1.msra.mxu0 0.0
        %1686 = vmatprep.subr.mxu0 0.0
        %1687 = vmatpush1.msra.mxu0 0.0
        %1688 = vmatprep.subr.mxu0 0.0
        %1689 = vmatpush1.msra.mxu0 0.0
        %1690 = vmatprep.subr.mxu0 0.0
        %1691 = vmatpush1.msra.mxu0 0.0
        %1692 = vmatprep.subr.mxu0 0.0
        %1693 = vmatpush1.msra.mxu0 0.0
        %1694 = vmatprep.subr.mxu0 0.0
        %1695 = vmatpush1.msra.mxu0 0.0
        %1696 = vmatprep.subr.mxu0 0.0
        %1697 = vmatpush1.msra.mxu0 0.0
        %1698 = vmatprep.subr.mxu0 0.0
        %1699 = vmatpush1.msra.mxu0 0.0
        %1700 = vmatprep.subr.mxu0 0.0
        %1701 = vmatpush1.msra.mxu0 0.0
        %1702 = vmatprep.subr.mxu0 0.0
        %1703 = vmatpush1.msra.mxu0 0.0
        %1704 = vmatprep.subr.mxu0 0.0
        %1705 = vmatpush1.msra.mxu0 0.0
        %1706 = vmatprep.subr.mxu0 0.0
        %1707 = vmatpush1.msra.mxu0 0.0
        %1708 = vmatprep.subr.mxu0 0.0
        %1709 = vmatpush1.msra.mxu0 0.0
        %1710 = vmatprep.subr.mxu0 0.0
        %1711 = vmatpush1.msra.mxu0 0.0
        %1712 = vmatprep.subr.mxu0 0.0
        %1713 = vmatpush1.msra.mxu0 0.0
        %1714 = vmatprep.subr.mxu0 0.0
        %1715 = vmatpush1.msra.mxu0 0.0
        %1716 = vmatprep.subr.mxu0 0.0
        %1717 = vmatpush1.msra.mxu0 0.0
        %1718 = vmatprep.subr.mxu0 0.0
        %1719 = vmatpush1.msra.mxu0 0.0
        %1720 = vmatprep.subr.mxu0 0.0
        %1721 = vmatpush1.msra.mxu0 0.0
        %1722 = vmatprep.subr.mxu0 0.0
        %1723 = vmatpush1.msra.mxu0 0.0
        %1724 = vmatprep.subr.mxu0 0.0
        %1725 = vmatpush1.msra.mxu0 0.0
        %1726 = vmatprep.subr.mxu0 0.0
        %1727 = vmatpush1.msra.mxu0 0.0
        %1728 = vmatprep.subr.mxu0 0.0
        %1729 = vmatpush1.msra.mxu0 0.0
        %1730 = vmatprep.subr.mxu0 0.0
        %1731 = vmatpush1.msra.mxu0 0.0
        %1732 = vmatprep.subr.mxu0 0.0
        %1733 = vmatpush1.msra.mxu0 0.0
        %1734 = vmatprep.subr.mxu0 0.0
        %1735 = vmatpush1.msra.mxu0 0.0
        %1736 = vmatprep.subr.mxu0 0.0
        %1737 = vmatpush1.msra.mxu0 0.0
        %1738 = vmatprep.mubr.f32.mxu0 0.0
        %1739 = vmatmul.mubr.f32.gmra.mrb[0].mxu0 %v1601
        %v1740 = vpop.f32.mrb[0].mxu0
        %v1741 = vadd.f32 0.0, %v1740
        %v1742 = vpop.f32.mrb[0].mxu0
        %1743 = vdwg.mxu0
        %v1744 = vadd.f32 %v1550, %v1670
        %v1745 = vadd.f32 %v1551, %v1672
        %v1746 = vadd.f32 %v1552, %v1741
        %s1747 = scalar_lea.vmem [#allocation5], 32
        %v1748 = vld [vmem:[%s1747] sm:$0xf]
        %1749 = vrot.lane.b32.xlu0 %v222, 90
        %v1750 = vpop.permute.xlu0 %1749
        %1751 = vrot.lane.b32.xlu0 %v223, 90
        %v1752 = vpop.permute.xlu0 %1751
        %1753 = vrot.lane.b32.xlu0 %v224, 90
        %v1754 = vpop.permute.xlu0 %1753
        %1755 = vrot.lane.b32.xlu0 %v225, 90
        %v1756 = vpop.permute.xlu0 %1755
        %1757 = vrot.lane.b32.xlu0 %v226, 90
        %v1758 = vpop.permute.xlu0 %1757
        %1759 = vrot.lane.b32.xlu0 %v227, 90
        %v1760 = vpop.permute.xlu0 %1759
        %1761 = vrot.lane.b32.xlu0 %v228, 90
        %v1762 = vpop.permute.xlu0 %1761
        %1763 = vrot.lane.b32.xlu0 %v229, 90
        %v1764 = vpop.permute.xlu0 %1763
        %1765 = vrot.lane.b32.xlu0 %v230, 90
        %v1766 = vpop.permute.xlu0 %1765
        %1767 = vrot.lane.b32.xlu0 %v231, 90
        %v1768 = vpop.permute.xlu0 %1767
        %1769 = vrot.lane.b32.xlu0 %v232, 90
        %v1770 = vpop.permute.xlu0 %1769
        %1771 = vrot.lane.b32.xlu0 %v233, 90
        %v1772 = vpop.permute.xlu0 %1771
        %vm1773 = vcmask 736256
        %v1774 = vsel %vm1773, %v1750, %v1752
        %v1775 = vsel %vm1773, %v1752, %v1754
        %v1776 = vsel %vm1773, %v1756, %v1758
        %v1777 = vsel %vm1773, %v1758, %v1760
        %v1778 = vsel %vm1773, %v1762, %v1764
        %v1779 = vsel %vm1773, %v1764, %v1766
        %v1780 = vsel %vm1773, %v1768, %v1770
        %v1781 = vsel %vm1773, %v1770, %v1772
        %v1795 = vsel %vm294, %v1748, 0
        %1797 = vmatprep.subr.mxu0 %v1775
        %1798 = vmatpush1.msra.mxu0 %v1774
        %1799 = vmatprep.subr.mxu0 %v1777
        %1800 = vmatpush1.msra.mxu0 %v1776
        %1801 = vmatprep.subr.mxu0 %v1779
        %1802 = vmatpush1.msra.mxu0 %v1778
        %1803 = vmatprep.subr.mxu0 %v1781
        %1804 = vmatpush1.msra.mxu0 %v1780
        %1805 = vmatprep.subr.mxu0 0.0
        %1806 = vmatpush1.msra.mxu0 0.0
        %1807 = vmatprep.subr.mxu0 0.0
        %1808 = vmatpush1.msra.mxu0 0.0
        %1809 = vmatprep.subr.mxu0 0.0
        %1810 = vmatpush1.msra.mxu0 0.0
        %1811 = vmatprep.subr.mxu0 0.0
        %1812 = vmatpush1.msra.mxu0 0.0
        %1813 = vmatprep.subr.mxu0 0.0
        %1814 = vmatpush1.msra.mxu0 0.0
        %1815 = vmatprep.subr.mxu0 0.0
        %1816 = vmatpush1.msra.mxu0 0.0
        %1817 = vmatprep.subr.mxu0 0.0
        %1818 = vmatpush1.msra.mxu0 0.0
        %1819 = vmatprep.subr.mxu0 0.0
        %1820 = vmatpush1.msra.mxu0 0.0
        %1821 = vmatprep.subr.mxu0 0.0
        %1822 = vmatpush1.msra.mxu0 0.0
        %1823 = vmatprep.subr.mxu0 0.0
        %1824 = vmatpush1.msra.mxu0 0.0
        %1825 = vmatprep.subr.mxu0 0.0
        %1826 = vmatpush1.msra.mxu0 0.0
        %1827 = vmatprep.subr.mxu0 0.0
        %1828 = vmatpush1.msra.mxu0 0.0
        %1829 = vmatprep.subr.mxu0 0.0
        %1830 = vmatpush1.msra.mxu0 0.0
        %1831 = vmatprep.subr.mxu0 0.0
        %1832 = vmatpush1.msra.mxu0 0.0
        %1833 = vmatprep.subr.mxu0 0.0
        %1834 = vmatpush1.msra.mxu0 0.0
        %1835 = vmatprep.subr.mxu0 0.0
        %1836 = vmatpush1.msra.mxu0 0.0
        %1837 = vmatprep.subr.mxu0 0.0
        %1838 = vmatpush1.msra.mxu0 0.0
        %1839 = vmatprep.subr.mxu0 0.0
        %1840 = vmatpush1.msra.mxu0 0.0
        %1841 = vmatprep.subr.mxu0 0.0
        %1842 = vmatpush1.msra.mxu0 0.0
        %1843 = vmatprep.subr.mxu0 0.0
        %1844 = vmatpush1.msra.mxu0 0.0
        %1845 = vmatprep.subr.mxu0 0.0
        %1846 = vmatpush1.msra.mxu0 0.0
        %1847 = vmatprep.subr.mxu0 0.0
        %1848 = vmatpush1.msra.mxu0 0.0
        %1849 = vmatprep.subr.mxu0 0.0
        %1850 = vmatpush1.msra.mxu0 0.0
        %1851 = vmatprep.subr.mxu0 0.0
        %1852 = vmatpush1.msra.mxu0 0.0
        %1853 = vmatprep.subr.mxu0 0.0
        %1854 = vmatpush1.msra.mxu0 0.0
        %1855 = vmatprep.subr.mxu0 0.0
        %1856 = vmatpush1.msra.mxu0 0.0
        %1857 = vmatprep.subr.mxu0 0.0
        %1858 = vmatpush1.msra.mxu0 0.0
        %1859 = vmatprep.subr.mxu0 0.0
        %1860 = vmatpush1.msra.mxu0 0.0
        %1861 = vmatprep.mubr.f32.mxu0 0.0
        %1862 = vmatmul.mubr.f32.gmra.mrb[0].mxu0 %v1795
        %v1863 = vpop.f32.mrb[0].mxu0
        %v1864 = vadd.f32 0.0, %v1863
        %v1865 = vpop.f32.mrb[0].mxu0
        %v1866 = vadd.f32 0.0, %v1865
        %1867 = vdwg.mxu0
        %1868 = vmatprep.subr.mxu0 0.0
        %1869 = vmatpush1.msra.mxu0 %v1754
        %1870 = vmatprep.subr.mxu0 0.0
        %1871 = vmatpush1.msra.mxu0 %v1760
        %1872 = vmatprep.subr.mxu0 0.0
        %1873 = vmatpush1.msra.mxu0 %v1766
        %1874 = vmatprep.subr.mxu0 0.0
        %1875 = vmatpush1.msra.mxu0 %v1772
        %1876 = vmatprep.subr.mxu0 0.0
        %1877 = vmatpush1.msra.mxu0 0.0
        %1878 = vmatprep.subr.mxu0 0.0
        %1879 = vmatpush1.msra.mxu0 0.0
        %1880 = vmatprep.subr.mxu0 0.0
        %1881 = vmatpush1.msra.mxu0 0.0
        %1882 = vmatprep.subr.mxu0 0.0
        %1883 = vmatpush1.msra.mxu0 0.0
        %1884 = vmatprep.subr.mxu0 0.0
        %1885 = vmatpush1.msra.mxu0 0.0
        %1886 = vmatprep.subr.mxu0 0.0
        %1887 = vmatpush1.msra.mxu0 0.0
        %1888 = vmatprep.subr.mxu0 0.0
        %1889 = vmatpush1.msra.mxu0 0.0
        %1890 = vmatprep.subr.mxu0 0.0
        %1891 = vmatpush1.msra.mxu0 0.0
        %1892 = vmatprep.subr.mxu0 0.0
        %1893 = vmatpush1.msra.mxu0 0.0
        %1894 = vmatprep.subr.mxu0 0.0
        %1895 = vmatpush1.msra.mxu0 0.0
        %1896 = vmatprep.subr.mxu0 0.0
        %1897 = vmatpush1.msra.mxu0 0.0
        %1898 = vmatprep.subr.mxu0 0.0
        %1899 = vmatpush1.msra.mxu0 0.0
        %1900 = vmatprep.subr.mxu0 0.0
        %1901 = vmatpush1.msra.mxu0 0.0
        %1902 = vmatprep.subr.mxu0 0.0
        %1903 = vmatpush1.msra.mxu0 0.0
        %1904 = vmatprep.subr.mxu0 0.0
        %1905 = vmatpush1.msra.mxu0 0.0
        %1906 = vmatprep.subr.mxu0 0.0
        %1907 = vmatpush1.msra.mxu0 0.0
        %1908 = vmatprep.subr.mxu0 0.0
        %1909 = vmatpush1.msra.mxu0 0.0
        %1910 = vmatprep.subr.mxu0 0.0
        %1911 = vmatpush1.msra.mxu0 0.0
        %1912 = vmatprep.subr.mxu0 0.0
        %1913 = vmatpush1.msra.mxu0 0.0
        %1914 = vmatprep.subr.mxu0 0.0
        %1915 = vmatpush1.msra.mxu0 0.0
        %1916 = vmatprep.subr.mxu0 0.0
        %1917 = vmatpush1.msra.mxu0 0.0
        %1918 = vmatprep.subr.mxu0 0.0
        %1919 = vmatpush1.msra.mxu0 0.0
        %1920 = vmatprep.subr.mxu0 0.0
        %1921 = vmatpush1.msra.mxu0 0.0
        %1922 = vmatprep.subr.mxu0 0.0
        %1923 = vmatpush1.msra.mxu0 0.0
        %1924 = vmatprep.subr.mxu0 0.0
        %1925 = vmatpush1.msra.mxu0 0.0
        %1926 = vmatprep.subr.mxu0 0.0
        %1927 = vmatpush1.msra.mxu0 0.0
        %1928 = vmatprep.subr.mxu0 0.0
        %1929 = vmatpush1.msra.mxu0 0.0
        %1930 = vmatprep.subr.mxu0 0.0
        %1931 = vmatpush1.msra.mxu0 0.0
        %1932 = vmatprep.mubr.f32.mxu0 0.0
        %1933 = vmatmul.mubr.f32.gmra.mrb[0].mxu0 %v1795
        %v1934 = vpop.f32.mrb[0].mxu0
        %v1935 = vadd.f32 0.0, %v1934
        %v1936 = vpop.f32.mrb[0].mxu0
        %1937 = vdwg.mxu0
        %v1938 = vadd.f32 %v1744, %v1864
        %v1939 = vadd.f32 %v1745, %v1866
        %v1940 = vadd.f32 %v1746, %v1935
        %v1941 = vld [vmem:[%s2] sm:$0xf]
        %1943 = vset.pattern.permute.xlu0 0
        %1944 = vperm.xlu0 %1943, %v1941
        %v1945 = vpop.permute.xlu0 %1944
        %v1947 = vadd.f32 %v1938, %v1945
        %v1948 = vadd.f32 %v1939, %v1945
        %v1949 = vadd.f32 %v1940, %v1945
        %v1952 = vcombine.low %v1947, %v1948
        %1954 = vst [vmem:[%s221] sm:$0xff] %v1952
        %vm1955 = vcmask 257024
        %1956 = vst.msk [vmem:[%s221 + $0x8] sm:$0xf] %vm1955, %v1949
        %s1957 = sand.u32 %s113, 1
        %s1958 = scalar_lea.sflag [#allocation4], %s1957
        %s1959 = sand.u32 %s113, 1
        %s1960 = smul.addr %s1959, 12
        %s1961 = scalar_lea.vmem [#allocation7], %s1960
        // Predicated region
        $region41: #{tpu_custom_call.1} parent=31 // pred_check
          %p1962 = pneg %p123
        $region42: #{tpu_custom_call.1} parent=31 // pred_check_branch
          %1964 = sbr.rel (%p1962) target = $region44
        $region43: #{tpu_custom_call.1} parent=31 // pred_region
          %s1966 = ssub.s32 192, 192
          %1967 = vsyncadd %s1958, %s1966
          %s1968 = smul.addr %s26, 3
          %s1969 = smul.addr %s25, 3
          %s1970 = sadd.s32 %s1968, %s1969
          %s1971 = smul.addr %s1970, 64
          %s1972 = scalar_lea.hbm %s3, %s1971
          %s1974 = sshll.u32 %s1961, 4
          %s1975 = int_to_ptr.vmem [resolvable:$true] %s1974
          %1977 = dma.vmem_to_hbm [thread:$0]  %s1975, 192, %s1972, %s1958
        $region44: #{tpu_custom_call.1} parent=31 // pred_fallthru
          _
      $region32: #{tpu_custom_call.1} parent=5 // pred_fallthru
        _
      %p1978 = scmp.le.s32.totalorder 2, %s16
      // Predicated region
      $region45: #{tpu_custom_call.1} parent=5 // pred_check
        %p1979 = pneg %p1978
      $region46: #{tpu_custom_call.1} parent=5 // pred_check_branch
        %1981 = sbr.rel (%p1979) target = $region48
      $region47: #{tpu_custom_call.1} parent=5 // pred_region
        %s1982 = ssub.s32 %s16, 2
        // Predicated region
        $region49: #{tpu_custom_call.1} parent=47 // pred_check
          %p1983 = pneg %p129
        $region50: #{tpu_custom_call.1} parent=47 // pred_check_branch
          %1985 = sbr.rel (%p1983) target = $region52
        $region51: #{tpu_custom_call.1} parent=47 // pred_region
          %s1986 = sand.u32 %s114, 1
          %s1987 = scalar_lea.sflag [#allocation4], %s1986
          %s1988 = sand.u32 %s114, 1
          %s1989 = smul.addr %s1988, 12
          %s1990 = scalar_lea.vmem [#allocation7], %s1989
          %1991 = dma.done %s1987, 192
        $region52: #{tpu_custom_call.1} parent=47 // pred_fallthru
          _
      $region48: #{tpu_custom_call.1} parent=5 // pred_fallthru
        _
    $region6: #{tpu_custom_call.1} parent=1 // loop_footer
      %s20 = sadd.s32 1, %s16
    $region7: #{tpu_custom_call.1} parent=1 // loop_footer_branch
      %15 = sbr.rel target = $region3
    $region8: #{tpu_custom_call.1} parent=1 // loop_exit
      _
    %1992 = vsyncpa [#allocation3], 1
    %s1993 = scalar_lea.sflag [#allocation3], 1
    %1994 = vsyncpa %s1993, 1
    %1995 = vsyncpa [#allocation6], 1
    %1996 = vsyncpa [#allocation4], 1
    %s1997 = scalar_lea.sflag [#allocation4], 1
    %1998 = vsyncpa %s1997, 1

</llo_original>
